<compile_context>
chip_gen: v5e
topology: v5e:2x2
jax: 0.10.0
libtpu: 0.0.40
codegen_flags: <defaults>
</compile_context>

<pallas_src>
import functools

import jax
import jax.numpy as jnp
from jax import lax
from jax.experimental import pallas as pl
from jax.experimental.pallas import tpu as pltpu


def _self_attention_kernel(hid, x_ref, wqkv_ref, bqkv_ref, wz_ref, bz_ref,
                           out_ref, attn_ref):
    # x_ref: (1, C, N) channel-major block for the current batch element.
    x_cn = x_ref[0]                                     # (C, N)
    C = x_cn.shape[0]

    # Fused Q/K/V 1x1-conv projections: one matmul, one broadcast bias add.
    # wqkv_ref: (R, C) rows = [wq; wk; wv; zero-pad], bqkv_ref: (R, 1).
    proj = jnp.dot(wqkv_ref[...], x_cn,
                   preferred_element_type=jnp.float32) + bqkv_ref[...]   # (R, N)

    q = proj[0:hid, :].T                  # (N, hid)  -- single small transpose
    k_t = proj[hid:2 * hid, :]            # (hid, N)  == K^T, as the MXU wants it
    v_t = proj[2 * hid:2 * hid + C, :]    # (C, N)    == V^T

    # scores[n, m] = sum_h q[n, h] * k[m, h]   (standard NN matmul with K^T).
    scores = jnp.dot(q, k_t, preferred_element_type=jnp.float32)         # (N, N)

    # Row softmax; reciprocal on the EUP (approx) keeps the VALU free.
    m = jnp.max(scores, axis=-1, keepdims=True)
    e = jnp.exp(scores - m)
    denom = jnp.sum(e, axis=-1, keepdims=True)
    attn = e * pl.reciprocal(denom, approx=True)                         # (N, N)

    # new_h^T[c, n] = sum_m v^T[c, m] * attn[n, m]  (NT form, lane-dense output).
    new_h_cn = lax.dot_general(v_t, attn, (((1,), (1,)), ((), ())),
                               preferred_element_type=jnp.float32)       # (C, N)

    # Final 1x1 conv (z): out[c_out, n] = sum_c wz[c_out, c] new_h[c, n] + bz.
    out = jnp.dot(wz_ref[...], new_h_cn,
                  preferred_element_type=jnp.float32) + bz_ref[...]      # (C, N)

    out_ref[0] = out
    attn_ref[0] = attn


def self_attention_pallas(x_nchw, params):
    """x_nchw: (B, C, H, W) float32. Returns (new_h NCHW, attention (B, N, N))."""
    B, C, H, W = x_nchw.shape
    N = H * W
    hid = params["wq"].shape[0]

    # NCHW -> channel-major (B, C, N): a pure reshape, no HBM transpose.
    x_cn = x_nchw.reshape(B, C, N)

    # Fuse projection weights along the output-channel axis; pad the row count
    # to a sublane multiple so the fused matmul and the q/k/v slices stay aligned.
    w_qkv = jnp.concatenate([params["wq"], params["wk"], params["wv"]], axis=0)  # (2*hid+C, C)
    b_qkv = jnp.concatenate([params["bq"], params["bk"], params["bv"]], axis=0)  # (2*hid+C,)
    rows = w_qkv.shape[0]
    rows_pad = (-rows) % 8
    if rows_pad:
        w_qkv = jnp.pad(w_qkv, ((0, rows_pad), (0, 0)))
        b_qkv = jnp.pad(b_qkv, ((0, rows_pad),))
    R = rows + rows_pad
    b_qkv = b_qkv.reshape(R, 1)
    wz = params["wz"]                       # (C, C) = (out, in)
    bz = params["bz"].reshape(C, 1)

    # VMEM budget: double-buffered blocks + in-kernel temporaries, 2x margin.
    est_bytes = 4 * (
        2 * C * N               # x block (double-buffered)
        + 2 * C * N             # out block
        + 2 * N * N             # attn block
        + 2 * (R * C + R + C * C + C)   # weights / biases
        + 2 * N * N             # scores + exp temporaries
        + 2 * R * N             # proj temporaries + q transpose
    )
    vmem_limit = int(min(max(2 * est_bytes, 32 * 1024 * 1024), 64 * 1024 * 1024))

    full = lambda b: (0, 0)
    kernel = functools.partial(_self_attention_kernel, hid)
    out_cn, attn = pl.pallas_call(
        kernel,
        out_shape=(
            jax.ShapeDtypeStruct((B, C, N), jnp.float32),
            jax.ShapeDtypeStruct((B, N, N), jnp.float32),
        ),
        grid_spec=pltpu.PrefetchScalarGridSpec(
            num_scalar_prefetch=0,
            grid=(B,),
            in_specs=[
                pl.BlockSpec((1, C, N), lambda b: (b, 0, 0)),   # x (channel-major)
                pl.BlockSpec((R, C), full),                     # fused wqkv
                pl.BlockSpec((R, 1), full),                     # fused bias
                pl.BlockSpec((C, C), full),                     # wz
                pl.BlockSpec((C, 1), full),                     # bz
            ],
            out_specs=[
                pl.BlockSpec((1, C, N), lambda b: (b, 0, 0)),   # new_h (C, N): lane-dense
                pl.BlockSpec((1, N, N), lambda b: (b, 0, 0)),   # attention
            ],
        ),
        compiler_params=pltpu.CompilerParams(
            dimension_semantics=("parallel",),
            vmem_limit_bytes=vmem_limit,
        ),
    )(x_cn, w_qkv, b_qkv, wz, bz)

    new_h = out_cn.reshape(B, C, H, W)
    return new_h, attn


def self_attention_ref(x_nchw, params):
    """Pure-JAX reference mirroring the PyTorch forward (for verification)."""
    B, C, H, W = x_nchw.shape
    N = H * W
    x_cn = x_nchw.reshape(B, C, N)
    q_h = jnp.einsum("oc,bcn->bon", params["wq"], x_cn) + params["bq"][None, :, None]
    k_h = jnp.einsum("oc,bcn->bon", params["wk"], x_cn) + params["bk"][None, :, None]
    v_h = jnp.einsum("oc,bcn->bon", params["wv"], x_cn) + params["bv"][None, :, None]
    scores = jnp.einsum("bhn,bhm->bnm", q_h, k_h)
    attn = jax.nn.softmax(scores, axis=-1)
    new_h = jnp.einsum("bnm,bcm->bcn", attn, v_h)
    out = jnp.einsum("oc,bcn->bon", params["wz"], new_h) + params["bz"][None, :, None]
    return out.reshape(B, C, H, W), attn


def init_params(key, input_dim, hidden_dim):
    """Conv2d(k=1) weights stored torch-style as (out_channels, in_channels)."""
    ks = jax.random.split(key, 8)
    s = 1.0 / float(input_dim) ** 0.5
    return {
        "wq": jax.random.uniform(ks[0], (hidden_dim, input_dim), jnp.float32, -s, s),
        "bq": jax.random.uniform(ks[1], (hidden_dim,), jnp.float32, -s, s),
        "wk": jax.random.uniform(ks[2], (hidden_dim, input_dim), jnp.float32, -s, s),
        "bk": jax.random.uniform(ks[3], (hidden_dim,), jnp.float32, -s, s),
        "wv": jax.random.uniform(ks[4], (input_dim, input_dim), jnp.float32, -s, s),
        "bv": jax.random.uniform(ks[5], (input_dim,), jnp.float32, -s, s),
        "wz": jax.random.uniform(ks[6], (input_dim, input_dim), jnp.float32, -s, s),
        "bz": jax.random.uniform(ks[7], (input_dim,), jnp.float32, -s, s),
    }


if __name__ == "__main__":
    B, C, H, W = 2, 4, 16, 16   # input_dim = 4
    hidden_dim = 32

    key = jax.random.PRNGKey(0)
    k_x, k_p = jax.random.split(key)
    x = jax.random.normal(k_x, (B, C, H, W), jnp.float32)
    params = init_params(k_p, C, hidden_dim)

    new_h, attn = jax.jit(self_attention_pallas)(x, params)
    jax.block_until_ready((new_h, attn))

    ref_h, ref_attn = self_attention_ref(x, params)
    assert new_h.shape == (B, C, H, W) and attn.shape == (B, H * W, H * W)
    # Approx (EUP) reciprocal in the softmax -> slightly looser tolerances.
    assert jnp.allclose(attn, ref_attn, atol=2e-3, rtol=2e-3), \
        float(jnp.max(jnp.abs(attn - ref_attn)))
    assert jnp.allclose(new_h, ref_h, atol=5e-3, rtol=5e-3), \
        float(jnp.max(jnp.abs(new_h - ref_h)))

    print("KERNEL_OK")
</pallas_src>

<mosaic_0001>
module attributes {stable_mosaic.version = 11 : i64} {
  func.func @_self_attention_kernel(%arg0: i32, %arg1: memref<1x4x256xf32, #tpu.memory_space<vmem>>, %arg2: memref<72x4xf32, #tpu.memory_space<vmem>>, %arg3: memref<72x1xf32, #tpu.memory_space<vmem>>, %arg4: memref<4x4xf32, #tpu.memory_space<vmem>>, %arg5: memref<4x1xf32, #tpu.memory_space<vmem>>, %arg6: memref<1x4x256xf32, #tpu.memory_space<vmem>>, %arg7: memref<1x256x256xf32, #tpu.memory_space<vmem>>) attributes {dimension_semantics = [#tpu.dimension_semantics<parallel>], iteration_bounds = array<i64: 2>, scalar_prefetch = 0 : i64, scratch_operands = 0 : i64, tpu.core_type = #tpu.core_type<tc>, window_params = [{transform_indices = @transform_0, window_bounds = array<i64: 1, 4, 256>}, {pipeline_mode = #tpu.pipeline_mode<synchronous>, transform_indices = @transform_1, window_bounds = array<i64: 72, 4>}, {pipeline_mode = #tpu.pipeline_mode<synchronous>, transform_indices = @transform_2, window_bounds = array<i64: 72, 1>}, {pipeline_mode = #tpu.pipeline_mode<synchronous>, transform_indices = @transform_3, window_bounds = array<i64: 4, 4>}, {pipeline_mode = #tpu.pipeline_mode<synchronous>, transform_indices = @transform_4, window_bounds = array<i64: 4, 1>}, {transform_indices = @transform_5, window_bounds = array<i64: 1, 4, 256>}, {transform_indices = @transform_6, window_bounds = array<i64: 1, 256, 256>}]} {
    %c0 = arith.constant 0 : index
    %c0_0 = arith.constant 0 : index
    %c0_1 = arith.constant 0 : index
    %0 = vector.load %arg1[%c0, %c0_0, %c0_1] : memref<1x4x256xf32, #tpu.memory_space<vmem>>, vector<1x4x256xf32>
    %1 = vector.shape_cast %0 : vector<1x4x256xf32> to vector<4x256xf32>
    %c0_2 = arith.constant 0 : index
    %c0_3 = arith.constant 0 : index
    %2 = vector.load %arg2[%c0_2, %c0_3] : memref<72x4xf32, #tpu.memory_space<vmem>>, vector<72x4xf32>
    %cst = arith.constant dense<0.000000e+00> : vector<72x256xf32>
    %3 = tpu.matmul %2, %1, %cst {dimension_numbers = #tpu.dot_dimension_numbers<[1], [0], [0], [1], [0, 0, 1, 1], [], []>} : vector<72x4xf32>, vector<4x256xf32>, vector<72x256xf32> -> vector<72x256xf32>
    %c0_4 = arith.constant 0 : index
    %c0_5 = arith.constant 0 : index
    %4 = vector.load %arg3[%c0_4, %c0_5] : memref<72x1xf32, #tpu.memory_space<vmem>>, vector<72x1xf32>
    %5 = vector.broadcast %4 : vector<72x1xf32> to vector<72x256xf32>
    %6 = arith.addf %3, %5 : vector<72x256xf32>
    %7 = vector.extract_strided_slice %6 {offsets = [0, 0], sizes = [32, 256], strides = [1, 1]} : vector<72x256xf32> to vector<32x256xf32>
    %8 = tpu.transpose %7, [1, 0] : vector<32x256xf32> -> vector<256x32xf32>
    %9 = vector.extract_strided_slice %6 {offsets = [32, 0], sizes = [32, 256], strides = [1, 1]} : vector<72x256xf32> to vector<32x256xf32>
    %10 = vector.extract_strided_slice %6 {offsets = [64, 0], sizes = [4, 256], strides = [1, 1]} : vector<72x256xf32> to vector<4x256xf32>
    %cst_6 = arith.constant dense<0.000000e+00> : vector<256x256xf32>
    %11 = tpu.matmul %8, %9, %cst_6 {dimension_numbers = #tpu.dot_dimension_numbers<[1], [0], [0], [1], [0, 0, 1, 1], [], []>} : vector<256x32xf32>, vector<32x256xf32>, vector<256x256xf32> -> vector<256x256xf32>
    %cst_7 = arith.constant dense<0xFF800000> : vector<256xf32>
    %12 = vector.multi_reduction <maximumf>, %11, %cst_7 [1] : vector<256x256xf32> to vector<256xf32>
    %13 = vector.shape_cast %12 : vector<256xf32> to vector<256x1xf32>
    %14 = vector.broadcast %13 : vector<256x1xf32> to vector<256x256xf32>
    %15 = arith.subf %11, %14 : vector<256x256xf32>
    %16 = math.exp %15 : vector<256x256xf32>
    %cst_8 = arith.constant dense<0.000000e+00> : vector<256xf32>
    %17 = vector.multi_reduction <add>, %16, %cst_8 [1] : vector<256x256xf32> to vector<256xf32>
    %18 = vector.shape_cast %17 : vector<256xf32> to vector<256x1xf32>
    %19 = tpu.reciprocal %18 {approx = true} : vector<256x1xf32> -> vector<256x1xf32>
    %20 = vector.broadcast %19 : vector<256x1xf32> to vector<256x256xf32>
    %21 = arith.mulf %16, %20 : vector<256x256xf32>
    %cst_9 = arith.constant dense<0.000000e+00> : vector<4x256xf32>
    %22 = tpu.matmul %10, %21, %cst_9 {dimension_numbers = #tpu.dot_dimension_numbers<[1], [1], [0], [0], [0, 0, 1, 0], [], []>} : vector<4x256xf32>, vector<256x256xf32>, vector<4x256xf32> -> vector<4x256xf32>
    %c0_10 = arith.constant 0 : index
    %c0_11 = arith.constant 0 : index
    %23 = vector.load %arg4[%c0_10, %c0_11] : memref<4x4xf32, #tpu.memory_space<vmem>>, vector<4x4xf32>
    %cst_12 = arith.constant dense<0.000000e+00> : vector<4x256xf32>
    %24 = tpu.matmul %23, %22, %cst_12 {dimension_numbers = #tpu.dot_dimension_numbers<[1], [0], [0], [1], [0, 0, 1, 1], [], []>} : vector<4x4xf32>, vector<4x256xf32>, vector<4x256xf32> -> vector<4x256xf32>
    %c0_13 = arith.constant 0 : index
    %c0_14 = arith.constant 0 : index
    %25 = vector.load %arg5[%c0_13, %c0_14] : memref<4x1xf32, #tpu.memory_space<vmem>>, vector<4x1xf32>
    %26 = vector.broadcast %25 : vector<4x1xf32> to vector<4x256xf32>
    %27 = arith.addf %24, %26 : vector<4x256xf32>
    %c0_15 = arith.constant 0 : index
    %c0_16 = arith.constant 0 : index
    %c0_17 = arith.constant 0 : index
    %28 = vector.load %arg6[%c0_15, %c0_16, %c0_17] : memref<1x4x256xf32, #tpu.memory_space<vmem>>, vector<1x4x256xf32>
    %29 = vector.shape_cast %28 : vector<1x4x256xf32> to vector<4x256xf32>
    %30 = vector.shape_cast %27 : vector<4x256xf32> to vector<1x4x256xf32>
    tpu.vector_store %arg6[%c0_15, %c0_16, %c0_17], %30 {strides = array<i32>} : memref<1x4x256xf32, #tpu.memory_space<vmem>>, vector<1x4x256xf32>,
    %c0_18 = arith.constant 0 : index
    %c0_19 = arith.constant 0 : index
    %c0_20 = arith.constant 0 : index
    %31 = vector.load %arg7[%c0_18, %c0_19, %c0_20] : memref<1x256x256xf32, #tpu.memory_space<vmem>>, vector<1x256x256xf32>
    %32 = vector.shape_cast %31 : vector<1x256x256xf32> to vector<256x256xf32>
    %33 = vector.shape_cast %21 : vector<256x256xf32> to vector<1x256x256xf32>
    tpu.vector_store %arg7[%c0_18, %c0_19, %c0_20], %33 {strides = array<i32>} : memref<1x256x256xf32, #tpu.memory_space<vmem>>, vector<1x256x256xf32>,
    return
  }
  func.func @transform_0(%arg0: i32) -> (i32, i32, i32) {
    %c0_i32 = arith.constant 0 : i32
    %c0_i32_0 = arith.constant 0 : i32
    %c0_i32_1 = arith.constant 0 : i32
    return %arg0, %c0_i32, %c0_i32_0 : i32, i32, i32
  }
  func.func @transform_1(%arg0: i32) -> (i32, i32) {
    %c0_i32 = arith.constant 0 : i32
    %c0_i32_0 = arith.constant 0 : i32
    %c0_i32_1 = arith.constant 0 : i32
    return %c0_i32, %c0_i32_0 : i32, i32
  }
  func.func @transform_2(%arg0: i32) -> (i32, i32) {
    %c0_i32 = arith.constant 0 : i32
    %c0_i32_0 = arith.constant 0 : i32
    %c0_i32_1 = arith.constant 0 : i32
    return %c0_i32, %c0_i32_0 : i32, i32
  }
  func.func @transform_3(%arg0: i32) -> (i32, i32) {
    %c0_i32 = arith.constant 0 : i32
    %c0_i32_0 = arith.constant 0 : i32
    %c0_i32_1 = arith.constant 0 : i32
    return %c0_i32, %c0_i32_0 : i32, i32
  }
  func.func @transform_4(%arg0: i32) -> (i32, i32) {
    %c0_i32 = arith.constant 0 : i32
    %c0_i32_0 = arith.constant 0 : i32
    %c0_i32_1 = arith.constant 0 : i32
    return %c0_i32, %c0_i32_0 : i32, i32
  }
  func.func @transform_5(%arg0: i32) -> (i32, i32, i32) {
    %c0_i32 = arith.constant 0 : i32
    %c0_i32_0 = arith.constant 0 : i32
    %c0_i32_1 = arith.constant 0 : i32
    return %arg0, %c0_i32, %c0_i32_0 : i32, i32, i32
  }
  func.func @transform_6(%arg0: i32) -> (i32, i32, i32) {
    %c0_i32 = arith.constant 0 : i32
    %c0_i32_0 = arith.constant 0 : i32
    %c0_i32_1 = arith.constant 0 : i32
    return %arg0, %c0_i32, %c0_i32_0 : i32, i32, i32
  }
}

</mosaic_0001>

<llo_original>
// kernel: self_attention_pallas.1
$region0: #{self_attention_pallas.1}
  #allocation0 [shape = 'u32[]', space=smem, size = 0x4, offset = 0x4, fixed_abs, tag = 'smem constant byte address 0x4 - core index']
  #allocation1 [shape = 'u32[72,128]{1,0:T(1,128)}', space=vmem, size = 0x9000, scoped, tag = 'internal scratch']
  %s0 = inlined_call_operand.vmem [shape: f32[2,4,256], index: 0, kind: input, shape index: {}]
  %s1 = inlined_call_operand.vmem [shape: f32[72,4], index: 1, kind: input, shape index: {}]
  %s2 = inlined_call_operand.vmem [shape: f32[72,1], index: 2, kind: input, shape index: {}]
  %s3 = inlined_call_operand.vmem [shape: f32[4,4], index: 3, kind: input, shape index: {}]
  %s4 = inlined_call_operand.vmem [shape: f32[4,1], index: 4, kind: input, shape index: {}]
  %s5 = inlined_call_operand.vmem [shape: f32[2,4,256], index: 5, kind: output, shape index: {0}]
  %s6 = inlined_call_operand.hbm [shape: f32[2,256,256], index: 6, kind: output, shape index: {1}]
  %7 = xla_tuple %s5, %s6
  %s8 = sld [smem:[#allocation0]]
  $region61: #{self_attention_pallas.1} parent=0
    _
  %s10 = ssub.s32 1, %s8
  %s11 = scalar_select 0, %s10, %s8
  $region1: #{self_attention_pallas.1} parent=0
    #allocation2 [shape = 'u8[524288]{0}', space=vmem, size = 0x80000, scoped, tag = 'output window, operand 1']
    #allocation3 [shape = 's32[2]{0}', space=sflag, size = 0x8, scoped, tag = 'scoped memory for self_attention_pallas.1']
    %12 = vsyncpa [#allocation3], 0
    %s13 = scalar_lea.sflag [#allocation3], 1
    %14 = vsyncpa %s13, 0
    loop: start=0, step=1, limit=4
    $region2: #{self_attention_pallas.1} parent=1 // loop_pre_header
      _
    $region3: #{self_attention_pallas.1} parent=1 // loop_header
      %s16 = sphi 0, %s20
      %p17 = scmp.ge.s32.totalorder %s16, 4
      %s26 = sphi 0, %s28
      %s29 = sphi 0, %s26
      %s30 = sphi 0, %s29
      %s46 = sphi 0, %s30
      %s50 = sphi 0, %s50
      %s52 = sphi 0, %s50
      %s53 = sphi 0, %s52
      %s67 = sphi 0, %s53
      %s71 = sphi 0, %s71
      %s73 = sphi 0, %s71
      %s74 = sphi 0, %s73
      %s88 = sphi 0, %s74
      %s92 = sphi 0, %s92
      %s94 = sphi 0, %s92
      %s95 = sphi 0, %s94
      %s109 = sphi 0, %s95
      %s113 = sphi 0, %s113
      %s115 = sphi 0, %s113
      %s116 = sphi 0, %s115
      %s130 = sphi 0, %s116
      %s136 = sphi 0, %s138
      %s139 = sphi 0, %s136
      %s140 = sphi 0, %s139
      %s156 = sphi 0, %s140
      %s162 = sphi 0, %s164
      %s165 = sphi 0, %s162
      %s166 = sphi 0, %s165
      %s182 = sphi 0, %s166
    $region4: #{self_attention_pallas.1} parent=1 // loop_header_branch
      %19 = sbr.rel (%p17) target = $region8
    $region5: #{self_attention_pallas.1} parent=1 // loop_body
      %s21 = ssub.s32 %s16, 1
      %s22 = ssub.s32 %s16, 2
      %s23 = sadd.s32 %s16, 1
      %s24 = ssub.s32 %s16, %s23
      %p25 = scmp.eq.s32.totalorder %s24, 0
      %s27 = sadd.s32 %s26, 1
      %s28 = scalar_select %p25, %s26, %s27
      %p31 = pneg %p25
      %p32 = scmp.eq.s32.totalorder %s16, 1
      %p33 = por %p31, %p32
      %p34 = scmp.ne.s32.totalorder %s26, %s29
      %p35 = scmp.eq.s32.totalorder %s16, 0
      %p36 = por %p34, %p35
      %p37 = scmp.ne.s32.totalorder %s26, %s29
      %p38 = scmp.eq.s32.totalorder %s21, 1
      %p39 = por %p37, %p38
      %p40 = scmp.ne.s32.totalorder %s29, %s30
      %p41 = scmp.eq.s32.totalorder %s21, 0
      %p42 = por %p40, %p41
      %p43 = scmp.ne.s32.totalorder %s29, %s30
      %p44 = scmp.eq.s32.totalorder %s22, 1
      %p45 = por %p43, %p44
      %p47 = scmp.ne.s32.totalorder %s30, %s46
      %p48 = scmp.eq.s32.totalorder %s22, 0
      %p49 = por %p47, %p48
      %s51 = sadd.s32 %s50, 1
      %p54 = scmp.eq.s32.totalorder %s16, 1
      %p55 = scmp.ne.s32.totalorder %s50, %s52
      %p56 = scmp.eq.s32.totalorder %s16, 0
      %p57 = por %p55, %p56
      %p58 = scmp.ne.s32.totalorder %s50, %s52
      %p59 = scmp.eq.s32.totalorder %s21, 1
      %p60 = por %p58, %p59
      %p61 = scmp.ne.s32.totalorder %s52, %s53
      %p62 = scmp.eq.s32.totalorder %s21, 0
      %p63 = por %p61, %p62
      %p64 = scmp.ne.s32.totalorder %s52, %s53
      %p65 = scmp.eq.s32.totalorder %s22, 1
      %p66 = por %p64, %p65
      %p68 = scmp.ne.s32.totalorder %s53, %s67
      %p69 = scmp.eq.s32.totalorder %s22, 0
      %p70 = por %p68, %p69
      %s72 = sadd.s32 %s71, 1
      %p75 = scmp.eq.s32.totalorder %s16, 1
      %p76 = scmp.ne.s32.totalorder %s71, %s73
      %p77 = scmp.eq.s32.totalorder %s16, 0
      %p78 = por %p76, %p77
      %p79 = scmp.ne.s32.totalorder %s71, %s73
      %p80 = scmp.eq.s32.totalorder %s21, 1
      %p81 = por %p79, %p80
      %p82 = scmp.ne.s32.totalorder %s73, %s74
      %p83 = scmp.eq.s32.totalorder %s21, 0
      %p84 = por %p82, %p83
      %p85 = scmp.ne.s32.totalorder %s73, %s74
      %p86 = scmp.eq.s32.totalorder %s22, 1
      %p87 = por %p85, %p86
      %p89 = scmp.ne.s32.totalorder %s74, %s88
      %p90 = scmp.eq.s32.totalorder %s22, 0
      %p91 = por %p89, %p90
      %s93 = sadd.s32 %s92, 1
      %p96 = scmp.eq.s32.totalorder %s16, 1
      %p97 = scmp.ne.s32.totalorder %s92, %s94
      %p98 = scmp.eq.s32.totalorder %s16, 0
      %p99 = por %p97, %p98
      %p100 = scmp.ne.s32.totalorder %s92, %s94
      %p101 = scmp.eq.s32.totalorder %s21, 1
      %p102 = por %p100, %p101
      %p103 = scmp.ne.s32.totalorder %s94, %s95
      %p104 = scmp.eq.s32.totalorder %s21, 0
      %p105 = por %p103, %p104
      %p106 = scmp.ne.s32.totalorder %s94, %s95
      %p107 = scmp.eq.s32.totalorder %s22, 1
      %p108 = por %p106, %p107
      %p110 = scmp.ne.s32.totalorder %s95, %s109
      %p111 = scmp.eq.s32.totalorder %s22, 0
      %p112 = por %p110, %p111
      %s114 = sadd.s32 %s113, 1
      %p117 = scmp.eq.s32.totalorder %s16, 1
      %p118 = scmp.ne.s32.totalorder %s113, %s115
      %p119 = scmp.eq.s32.totalorder %s16, 0
      %p120 = por %p118, %p119
      %p121 = scmp.ne.s32.totalorder %s113, %s115
      %p122 = scmp.eq.s32.totalorder %s21, 1
      %p123 = por %p121, %p122
      %p124 = scmp.ne.s32.totalorder %s115, %s116
      %p125 = scmp.eq.s32.totalorder %s21, 0
      %p126 = por %p124, %p125
      %p127 = scmp.ne.s32.totalorder %s115, %s116
      %p128 = scmp.eq.s32.totalorder %s22, 1
      %p129 = por %p127, %p128
      %p131 = scmp.ne.s32.totalorder %s116, %s130
      %p132 = scmp.eq.s32.totalorder %s22, 0
      %p133 = por %p131, %p132
      %s134 = ssub.s32 %s16, %s23
      %p135 = scmp.eq.s32.totalorder %s134, 0
      %s137 = sadd.s32 %s136, 1
      %s138 = scalar_select %p135, %s136, %s137
      %p141 = pneg %p135
      %p142 = scmp.eq.s32.totalorder %s16, 1
      %p143 = por %p141, %p142
      %p144 = scmp.ne.s32.totalorder %s136, %s139
      %p145 = scmp.eq.s32.totalorder %s16, 0
      %p146 = por %p144, %p145
      %p147 = scmp.ne.s32.totalorder %s136, %s139
      %p148 = scmp.eq.s32.totalorder %s21, 1
      %p149 = por %p147, %p148
      %p150 = scmp.ne.s32.totalorder %s139, %s140
      %p151 = scmp.eq.s32.totalorder %s21, 0
      %p152 = por %p150, %p151
      %p153 = scmp.ne.s32.totalorder %s139, %s140
      %p154 = scmp.eq.s32.totalorder %s22, 1
      %p155 = por %p153, %p154
      %p157 = scmp.ne.s32.totalorder %s140, %s156
      %p158 = scmp.eq.s32.totalorder %s22, 0
      %p159 = por %p157, %p158
      %s160 = ssub.s32 %s16, %s23
      %p161 = scmp.eq.s32.totalorder %s160, 0
      %s163 = sadd.s32 %s162, 1
      %s164 = scalar_select %p161, %s162, %s163
      %p167 = pneg %p161
      %p168 = scmp.eq.s32.totalorder %s16, 1
      %p169 = por %p167, %p168
      %p170 = scmp.ne.s32.totalorder %s162, %s165
      %p171 = scmp.eq.s32.totalorder %s16, 0
      %p172 = por %p170, %p171
      %p173 = scmp.ne.s32.totalorder %s162, %s165
      %p174 = scmp.eq.s32.totalorder %s21, 1
      %p175 = por %p173, %p174
      %p176 = scmp.ne.s32.totalorder %s165, %s166
      %p177 = scmp.eq.s32.totalorder %s21, 0
      %p178 = por %p176, %p177
      %p179 = scmp.ne.s32.totalorder %s165, %s166
      %p180 = scmp.eq.s32.totalorder %s22, 1
      %p181 = por %p179, %p180
      %p183 = scmp.ne.s32.totalorder %s166, %s182
      %p184 = scmp.eq.s32.totalorder %s22, 0
      %p185 = por %p183, %p184
      %p186 = scmp.le.s32.totalorder 1, %s16
      %p187 = scmp.lt.s32.totalorder %s16, 3
      %p188 = pnand %p186, %p187
      %p189 = pneg %p188
      // Predicated region
      $region9: #{self_attention_pallas.1} parent=5 // pred_check
        _
      $region10: #{self_attention_pallas.1} parent=5 // pred_check_branch
        %191 = sbr.rel (%p188) target = $region12
      $region11: #{self_attention_pallas.1} parent=5 // pred_region
        %s192 = ssub.s32 %s16, 1
        // Predicated region
        $region13: #{self_attention_pallas.1} parent=11 // pred_check
          %p193 = pneg %p63
        $region14: #{self_attention_pallas.1} parent=11 // pred_check_branch
          %195 = sbr.rel (%p193) target = $region16
        $region15: #{self_attention_pallas.1} parent=11 // pred_region
          _
        $region16: #{self_attention_pallas.1} parent=11 // pred_fallthru
          _
        // Predicated region
        $region17: #{self_attention_pallas.1} parent=11 // pred_check
          %p196 = pneg %p84
        $region18: #{self_attention_pallas.1} parent=11 // pred_check_branch
          %198 = sbr.rel (%p196) target = $region20
        $region19: #{self_attention_pallas.1} parent=11 // pred_region
          _
        $region20: #{self_attention_pallas.1} parent=11 // pred_fallthru
          _
        // Predicated region
        $region21: #{self_attention_pallas.1} parent=11 // pred_check
          %p199 = pneg %p105
        $region22: #{self_attention_pallas.1} parent=11 // pred_check_branch
          %201 = sbr.rel (%p199) target = $region24
        $region23: #{self_attention_pallas.1} parent=11 // pred_region
          _
        $region24: #{self_attention_pallas.1} parent=11 // pred_fallthru
          _
        // Predicated region
        $region25: #{self_attention_pallas.1} parent=11 // pred_check
          %p202 = pneg %p126
        $region26: #{self_attention_pallas.1} parent=11 // pred_check_branch
          %204 = sbr.rel (%p202) target = $region28
        $region27: #{self_attention_pallas.1} parent=11 // pred_region
          _
        $region28: #{self_attention_pallas.1} parent=11 // pred_fallthru
          _
      $region12: #{self_attention_pallas.1} parent=5 // pred_fallthru
        _
      %p205 = scmp.lt.s32.totalorder %s16, 2
      // Predicated region
      $region29: #{self_attention_pallas.1} parent=5 // pred_check
        %p206 = pneg %p205
      $region30: #{self_attention_pallas.1} parent=5 // pred_check_branch
        %208 = sbr.rel (%p206) target = $region32
      $region31: #{self_attention_pallas.1} parent=5 // pred_region
        // Predicated region
        $region33: #{self_attention_pallas.1} parent=31 // pred_check
          %p209 = pneg %p36
        $region34: #{self_attention_pallas.1} parent=31 // pred_check_branch
          %211 = sbr.rel (%p209) target = $region36
        $region35: #{self_attention_pallas.1} parent=31 // pred_region
          %p212 = scmp.lt.s32.totalorder %s16, 1
          %s213 = scalar_select %p212, %s16, 1
          %s214 = smul.addr %s213, 2
          %s215 = smul.addr %s214, 4
          %s216 = scalar_lea.vmem %s0, %s215
        $region36: #{self_attention_pallas.1} parent=31 // pred_fallthru
          _
      $region32: #{self_attention_pallas.1} parent=5 // pred_fallthru
        _
      %p217 = scmp.le.s32.totalorder 1, %s16
      %p218 = scmp.lt.s32.totalorder %s16, 3
      %p219 = pnand %p217, %p218
      %p220 = pneg %p219
      // Predicated region
      $region37: #{self_attention_pallas.1} parent=5 // pred_check
        _
      $region38: #{self_attention_pallas.1} parent=5 // pred_check_branch
        %222 = sbr.rel (%p219) target = $region40
      $region39: #{self_attention_pallas.1} parent=5 // pred_region
        %s223 = ssub.s32 %s16, 1
        %p224 = scmp.lt.s32.totalorder %s21, 1
        %s225 = scalar_select %p224, %s21, 1
        %s226 = smul.addr %s225, 2
        %s227 = smul.addr %s226, 4
        %s228 = scalar_lea.vmem %s0, %s227
        %p229 = pneg %p42
        %p230 = pneg %p39
        %p231 = pneg %p63
        %p232 = pneg %p60
        %p233 = pneg %p84
        %p234 = pneg %p81
        %p235 = pneg %p105
        %p236 = pneg %p102
        %p237 = pneg %p126
        %p238 = pneg %p123
        %p239 = pneg %p152
        %p240 = pneg %p149
        %p241 = scmp.lt.s32.totalorder %s21, 1
        %s242 = scalar_select %p241, %s21, 1
        %s243 = smul.addr %s242, 2
        %s244 = smul.addr %s243, 4
        %s245 = scalar_lea.vmem %s5, %s244
        %p246 = pneg %p178
        %p247 = pneg %p175
        %s248 = sand.u32 %s165, 1
        %s249 = scalar_lea.sflag [#allocation3], %s248
        %s250 = sand.u32 %s165, 1
        %s251 = smul.addr %s250, 512
        %s252 = scalar_lea.vmem [#allocation2], %s251
        %p253 = scmp.lt.s32.totalorder %s21, 1
        %s254 = scalar_select %p253, %s21, 1
        %s255 = smul.addr %s254, 2
        %s256 = smul.addr %s255, 4
        %s257 = scalar_lea.vmem %s0, %s256
        %p258 = scmp.lt.s32.totalorder %s21, 1
        %s259 = scalar_select %p258, %s21, 1
        %s260 = smul.addr %s259, 2
        %s261 = smul.addr %s260, 4
        %s262 = scalar_lea.vmem %s5, %s261
        %v263 = vld [vmem:[%s257] sm:$0xff]
        %v264 = vld [vmem:[%s1] sm:$0xff]
        %v265 = vld [vmem:[%s1 + $0x8] sm:$0xff]
        %v266 = vld [vmem:[%s1 + $0x10] sm:$0xff]
        %v267 = vld [vmem:[%s1 + $0x18] sm:$0xff]
        %v268 = vld [vmem:[%s1 + $0x20] sm:$0xff]
        %v269 = vld [vmem:[%s1 + $0x28] sm:$0xff]
        %v270 = vld [vmem:[%s1 + $0x30] sm:$0xff]
        %v271 = vld [vmem:[%s1 + $0x38] sm:$0xff]
        %v272 = vld [vmem:[%s1 + $0x40] sm:$0xff]
        %v273 = vld [vmem:[%s2] sm:$0xff]
        %v274 = vld [vmem:[%s2 + $0x8] sm:$0xff]
        %v275 = vld [vmem:[%s2 + $0x10] sm:$0xff]
        %v276 = vld [vmem:[%s2 + $0x18] sm:$0xff]
        %v277 = vld [vmem:[%s2 + $0x20] sm:$0xff]
        %v278 = vld [vmem:[%s2 + $0x28] sm:$0xff]
        %v279 = vld [vmem:[%s2 + $0x30] sm:$0xff]
        %v280 = vld [vmem:[%s2 + $0x38] sm:$0xff]
        %v281 = vld [vmem:[%s2 + $0x40] sm:$0xff]
        %283 = vset.pattern.permute.xlu0 0
        %284 = vperm.xlu0 %283, %v273
        %v285 = vpop.permute.xlu0 %284
        %288 = vset.pattern.permute.xlu0 0
        %289 = vperm.xlu0 %288, %v274
        %v290 = vpop.permute.xlu0 %289
        %293 = vset.pattern.permute.xlu0 0
        %294 = vperm.xlu0 %293, %v275
        %v295 = vpop.permute.xlu0 %294
        %298 = vset.pattern.permute.xlu0 0
        %299 = vperm.xlu0 %298, %v276
        %v300 = vpop.permute.xlu0 %299
        %303 = vset.pattern.permute.xlu0 0
        %304 = vperm.xlu0 %303, %v277
        %v305 = vpop.permute.xlu0 %304
        %308 = vset.pattern.permute.xlu0 0
        %309 = vperm.xlu0 %308, %v278
        %v310 = vpop.permute.xlu0 %309
        %313 = vset.pattern.permute.xlu0 0
        %314 = vperm.xlu0 %313, %v279
        %v315 = vpop.permute.xlu0 %314
        %318 = vset.pattern.permute.xlu0 0
        %319 = vperm.xlu0 %318, %v280
        %v320 = vpop.permute.xlu0 %319
        %323 = vset.pattern.permute.xlu0 0
        %324 = vperm.xlu0 %323, %v281
        %v325 = vpop.permute.xlu0 %324
        %328 = vst [vmem:[#allocation1] ss:$2 sm:$0xff] %v263
        %v329 = vld.sshfl [vmem:[#allocation1] sm:$0xff pattern:$0x75316420]
        %v330 = vld.sshfl [vmem:[#allocation1 + $0x8] sm:$0xff pattern:$0x75316420]
        %vm331 = vcmask 31744
        %v333 = vsel %vm331, %v264, 0
        %v336 = vsel %vm331, %v265, 0
        %v339 = vsel %vm331, %v266, 0
        %v342 = vsel %vm331, %v267, 0
        %v345 = vsel %vm331, %v268, 0
        %v348 = vsel %vm331, %v269, 0
        %v351 = vsel %vm331, %v270, 0
        %v354 = vsel %vm331, %v271, 0
        %v357 = vsel %vm331, %v272, 0
        %vm359 = vcmask 1043456
        %v360 = vsel %vm359, %v329, 0
        %v362 = vsel %vm359, %v330, 0
        %364 = vmatpush.msra.mxu0 0.0
        %365 = vmatpush.msra.mxu0 0.0
        %366 = vmatpush.msra.mxu0 0.0
        %367 = vmatpush.msra.mxu0 0.0
        %368 = vmatpush.msra.mxu0 0.0
        %369 = vmatpush.msra.mxu0 0.0
        %370 = vmatpush.msra.mxu0 0.0
        %371 = vmatpush.msra.mxu0 0.0
        %372 = vmatpush.msra.mxu0 0.0
        %373 = vmatpush.msra.mxu0 0.0
        %374 = vmatpush.msra.mxu0 0.0
        %375 = vmatpush.msra.mxu0 0.0
        %376 = vmatpush.msra.mxu0 0.0
        %377 = vmatpush.msra.mxu0 0.0
        %378 = vmatpush.msra.mxu0 0.0
        %379 = vmatpush.msra.mxu0 %v360
        %380 = vmatmul.f32.gmra.mxu0 %v333
        %v381 = vpop.f32.mrf.mxu0
        %v382 = vadd.f32 %v285, %v381
        %383 = vmatmul.f32.gmra.mxu0 %v336
        %v384 = vpop.f32.mrf.mxu0
        %v385 = vadd.f32 %v290, %v384
        %386 = vmatmul.f32.gmra.mxu0 %v339
        %v387 = vpop.f32.mrf.mxu0
        %v388 = vadd.f32 %v295, %v387
        %389 = vmatmul.f32.gmra.mxu0 %v342
        %v390 = vpop.f32.mrf.mxu0
        %v391 = vadd.f32 %v300, %v390
        %392 = vmatmul.f32.gmra.mxu0 %v345
        %v393 = vpop.f32.mrf.mxu0
        %v394 = vadd.f32 %v305, %v393
        %395 = vmatmul.f32.gmra.mxu0 %v348
        %v396 = vpop.f32.mrf.mxu0
        %v397 = vadd.f32 %v310, %v396
        %398 = vmatmul.f32.gmra.mxu0 %v351
        %v399 = vpop.f32.mrf.mxu0
        %v400 = vadd.f32 %v315, %v399
        %401 = vmatmul.f32.gmra.mxu0 %v354
        %v402 = vpop.f32.mrf.mxu0
        %v403 = vadd.f32 %v320, %v402
        %404 = vmatmul.f32.gmra.mxu0 %v357
        %v405 = vpop.f32.mrf.mxu0
        %v406 = vadd.f32 %v325, %v405
        %407 = vdwg.mxu0
        %408 = vmatpush.msra.mxu0 0.0
        %409 = vmatpush.msra.mxu0 0.0
        %410 = vmatpush.msra.mxu0 0.0
        %411 = vmatpush.msra.mxu0 0.0
        %412 = vmatpush.msra.mxu0 0.0
        %413 = vmatpush.msra.mxu0 0.0
        %414 = vmatpush.msra.mxu0 0.0
        %415 = vmatpush.msra.mxu0 0.0
        %416 = vmatpush.msra.mxu0 0.0
        %417 = vmatpush.msra.mxu0 0.0
        %418 = vmatpush.msra.mxu0 0.0
        %419 = vmatpush.msra.mxu0 0.0
        %420 = vmatpush.msra.mxu0 0.0
        %421 = vmatpush.msra.mxu0 0.0
        %422 = vmatpush.msra.mxu0 0.0
        %423 = vmatpush.msra.mxu0 %v362
        %424 = vmatmul.f32.gmra.mxu0 %v333
        %v425 = vpop.f32.mrf.mxu0
        %v426 = vadd.f32 %v285, %v425
        %427 = vmatmul.f32.gmra.mxu0 %v336
        %v428 = vpop.f32.mrf.mxu0
        %v429 = vadd.f32 %v290, %v428
        %430 = vmatmul.f32.gmra.mxu0 %v339
        %v431 = vpop.f32.mrf.mxu0
        %v432 = vadd.f32 %v295, %v431
        %433 = vmatmul.f32.gmra.mxu0 %v342
        %v434 = vpop.f32.mrf.mxu0
        %v435 = vadd.f32 %v300, %v434
        %436 = vmatmul.f32.gmra.mxu0 %v345
        %v437 = vpop.f32.mrf.mxu0
        %v438 = vadd.f32 %v305, %v437
        %439 = vmatmul.f32.gmra.mxu0 %v348
        %v440 = vpop.f32.mrf.mxu0
        %v441 = vadd.f32 %v310, %v440
        %442 = vmatmul.f32.gmra.mxu0 %v351
        %v443 = vpop.f32.mrf.mxu0
        %v444 = vadd.f32 %v315, %v443
        %445 = vmatmul.f32.gmra.mxu0 %v354
        %v446 = vpop.f32.mrf.mxu0
        %v447 = vadd.f32 %v320, %v446
        %448 = vmatmul.f32.gmra.mxu0 %v357
        %v449 = vpop.f32.mrf.mxu0
        %v450 = vadd.f32 %v325, %v449
        %451 = vdwg.mxu0
        %452 = vxpose.xlu0.b32.start [1/16] %v382, 128
        %453 = vxpose.xlu0.b32.cont [2/16] %v385, 128
        %454 = vxpose.xlu0.b32.cont [3/16] %v388, 128
        %455 = vxpose.xlu0.b32.cont [4/16] %v391, 128
        %456 = vxpose.xlu0.b32.cont [5/16] 0.0, 128
        %457 = vxpose.xlu0.b32.cont [6/16] 0.0, 128
        %458 = vxpose.xlu0.b32.cont [7/16] 0.0, 128
        %459 = vxpose.xlu0.b32.cont [8/16] 0.0, 128
        %460 = vxpose.xlu0.b32.cont [9/16] 0.0, 128
        %461 = vxpose.xlu0.b32.cont [10/16] 0.0, 128
        %462 = vxpose.xlu0.b32.cont [11/16] 0.0, 128
        %463 = vxpose.xlu0.b32.cont [12/16] 0.0, 128
        %464 = vxpose.xlu0.b32.cont [13/16] 0.0, 128
        %465 = vxpose.xlu0.b32.cont [14/16] 0.0, 128
        %466 = vxpose.xlu0.b32.cont [15/16] 0.0, 128
        %467 = vxpose.xlu0.b32.end [16/16] 0.0, 128
        %v468 = vpop.trf.xlu0
        %v469 = vpop.trf.xlu0
        %v470 = vpop.trf.xlu0
        %v471 = vpop.trf.xlu0
        %v472 = vpop.trf.xlu0
        %v473 = vpop.trf.xlu0
        %v474 = vpop.trf.xlu0
        %v475 = vpop.trf.xlu0
        %v476 = vpop.trf.xlu0
        %v477 = vpop.trf.xlu0
        %v478 = vpop.trf.xlu0
        %v479 = vpop.trf.xlu0
        %v480 = vpop.trf.xlu0
        %v481 = vpop.trf.xlu0
        %v482 = vpop.trf.xlu0
        %v483 = vpop.trf.xlu0
        %484 = vxpose.xlu0.b32.start [1/16] %v426, 128
        %485 = vxpose.xlu0.b32.cont [2/16] %v429, 128
        %486 = vxpose.xlu0.b32.cont [3/16] %v432, 128
        %487 = vxpose.xlu0.b32.cont [4/16] %v435, 128
        %488 = vxpose.xlu0.b32.cont [5/16] 0.0, 128
        %489 = vxpose.xlu0.b32.cont [6/16] 0.0, 128
        %490 = vxpose.xlu0.b32.cont [7/16] 0.0, 128
        %491 = vxpose.xlu0.b32.cont [8/16] 0.0, 128
        %492 = vxpose.xlu0.b32.cont [9/16] 0.0, 128
        %493 = vxpose.xlu0.b32.cont [10/16] 0.0, 128
        %494 = vxpose.xlu0.b32.cont [11/16] 0.0, 128
        %495 = vxpose.xlu0.b32.cont [12/16] 0.0, 128
        %496 = vxpose.xlu0.b32.cont [13/16] 0.0, 128
        %497 = vxpose.xlu0.b32.cont [14/16] 0.0, 128
        %498 = vxpose.xlu0.b32.cont [15/16] 0.0, 128
        %499 = vxpose.xlu0.b32.end [16/16] 0.0, 128
        %v500 = vpop.trf.xlu0
        %v501 = vpop.trf.xlu0
        %v502 = vpop.trf.xlu0
        %v503 = vpop.trf.xlu0
        %v504 = vpop.trf.xlu0
        %v505 = vpop.trf.xlu0
        %v506 = vpop.trf.xlu0
        %v507 = vpop.trf.xlu0
        %v508 = vpop.trf.xlu0
        %v509 = vpop.trf.xlu0
        %v510 = vpop.trf.xlu0
        %v511 = vpop.trf.xlu0
        %v512 = vpop.trf.xlu0
        %v513 = vpop.trf.xlu0
        %v514 = vpop.trf.xlu0
        %v515 = vpop.trf.xlu0
        %vm516 = vcmask 261120
        %v518 = vsel %vm516, %v468, 0
        %v521 = vsel %vm516, %v469, 0
        %v524 = vsel %vm516, %v470, 0
        %v527 = vsel %vm516, %v471, 0
        %v530 = vsel %vm516, %v472, 0
        %v533 = vsel %vm516, %v473, 0
        %v536 = vsel %vm516, %v474, 0
        %v539 = vsel %vm516, %v475, 0
        %v542 = vsel %vm516, %v476, 0
        %v545 = vsel %vm516, %v477, 0
        %v548 = vsel %vm516, %v478, 0
        %v551 = vsel %vm516, %v479, 0
        %v554 = vsel %vm516, %v480, 0
        %v557 = vsel %vm516, %v481, 0
        %v560 = vsel %vm516, %v482, 0
        %v563 = vsel %vm516, %v483, 0
        %v566 = vsel %vm516, %v500, 0
        %v569 = vsel %vm516, %v501, 0
        %v572 = vsel %vm516, %v502, 0
        %v575 = vsel %vm516, %v503, 0
        %v578 = vsel %vm516, %v504, 0
        %v581 = vsel %vm516, %v505, 0
        %v584 = vsel %vm516, %v506, 0
        %v587 = vsel %vm516, %v507, 0
        %v590 = vsel %vm516, %v508, 0
        %v593 = vsel %vm516, %v509, 0
        %v596 = vsel %vm516, %v510, 0
        %v599 = vsel %vm516, %v511, 0
        %v602 = vsel %vm516, %v512, 0
        %v605 = vsel %vm516, %v513, 0
        %v608 = vsel %vm516, %v514, 0
        %v611 = vsel %vm516, %v515, 0
        %613 = vmatpush.msra.mxu0 0.0
        %614 = vmatpush.msra.mxu0 0.0
        %615 = vmatpush.msra.mxu0 0.0
        %616 = vmatpush.msra.mxu0 0.0
        %617 = vmatpush.msra.mxu0 0.0
        %618 = vmatpush.msra.mxu0 0.0
        %619 = vmatpush.msra.mxu0 0.0
        %620 = vmatpush.msra.mxu0 0.0
        %621 = vmatpush.msra.mxu0 0.0
        %622 = vmatpush.msra.mxu0 0.0
        %623 = vmatpush.msra.mxu0 0.0
        %624 = vmatpush.msra.mxu0 0.0
        %625 = vmatpush.msra.mxu0 %v403
        %626 = vmatpush.msra.mxu0 %v400
        %627 = vmatpush.msra.mxu0 %v397
        %628 = vmatpush.msra.mxu0 %v394
        %629 = vmatmul.f32.gmra.mxu0 %v518
        %v630 = vpop.f32.mrf.mxu0
        %v631 = vadd.f32 0.0, %v630
        %632 = vmatmul.f32.gmra.mxu0 %v521
        %v633 = vpop.f32.mrf.mxu0
        %v634 = vadd.f32 0.0, %v633
        %635 = vmatmul.f32.gmra.mxu0 %v524
        %v636 = vpop.f32.mrf.mxu0
        %v637 = vadd.f32 0.0, %v636
        %638 = vmatmul.f32.gmra.mxu0 %v527
        %v639 = vpop.f32.mrf.mxu0
        %v640 = vadd.f32 0.0, %v639
        %641 = vmatmul.f32.gmra.mxu0 %v530
        %v642 = vpop.f32.mrf.mxu0
        %v643 = vadd.f32 0.0, %v642
        %644 = vmatmul.f32.gmra.mxu0 %v533
        %v645 = vpop.f32.mrf.mxu0
        %v646 = vadd.f32 0.0, %v645
        %647 = vmatmul.f32.gmra.mxu0 %v536
        %v648 = vpop.f32.mrf.mxu0
        %v649 = vadd.f32 0.0, %v648
        %650 = vmatmul.f32.gmra.mxu0 %v539
        %v651 = vpop.f32.mrf.mxu0
        %v652 = vadd.f32 0.0, %v651
        %653 = vmatmul.f32.gmra.mxu0 %v542
        %v654 = vpop.f32.mrf.mxu0
        %v655 = vadd.f32 0.0, %v654
        %656 = vmatmul.f32.gmra.mxu0 %v545
        %v657 = vpop.f32.mrf.mxu0
        %v658 = vadd.f32 0.0, %v657
        %659 = vmatmul.f32.gmra.mxu0 %v548
        %v660 = vpop.f32.mrf.mxu0
        %v661 = vadd.f32 0.0, %v660
        %662 = vmatmul.f32.gmra.mxu0 %v551
        %v663 = vpop.f32.mrf.mxu0
        %v664 = vadd.f32 0.0, %v663
        %665 = vmatmul.f32.gmra.mxu0 %v554
        %v666 = vpop.f32.mrf.mxu0
        %v667 = vadd.f32 0.0, %v666
        %668 = vmatmul.f32.gmra.mxu0 %v557
        %v669 = vpop.f32.mrf.mxu0
        %v670 = vadd.f32 0.0, %v669
        %671 = vmatmul.f32.gmra.mxu0 %v560
        %v672 = vpop.f32.mrf.mxu0
        %v673 = vadd.f32 0.0, %v672
        %674 = vmatmul.f32.gmra.mxu0 %v563
        %v675 = vpop.f32.mrf.mxu0
        %v676 = vadd.f32 0.0, %v675
        %677 = vmatmul.f32.gmra.mxu0 %v566
        %v678 = vpop.f32.mrf.mxu0
        %v679 = vadd.f32 0.0, %v678
        %680 = vmatmul.f32.gmra.mxu0 %v569
        %v681 = vpop.f32.mrf.mxu0
        %v682 = vadd.f32 0.0, %v681
        %683 = vmatmul.f32.gmra.mxu0 %v572
        %v684 = vpop.f32.mrf.mxu0
        %v685 = vadd.f32 0.0, %v684
        %686 = vmatmul.f32.gmra.mxu0 %v575
        %v687 = vpop.f32.mrf.mxu0
        %v688 = vadd.f32 0.0, %v687
        %689 = vmatmul.f32.gmra.mxu0 %v578
        %v690 = vpop.f32.mrf.mxu0
        %v691 = vadd.f32 0.0, %v690
        %692 = vmatmul.f32.gmra.mxu0 %v581
        %v693 = vpop.f32.mrf.mxu0
        %v694 = vadd.f32 0.0, %v693
        %695 = vmatmul.f32.gmra.mxu0 %v584
        %v696 = vpop.f32.mrf.mxu0
        %v697 = vadd.f32 0.0, %v696
        %698 = vmatmul.f32.gmra.mxu0 %v587
        %v699 = vpop.f32.mrf.mxu0
        %v700 = vadd.f32 0.0, %v699
        %701 = vmatmul.f32.gmra.mxu0 %v590
        %v702 = vpop.f32.mrf.mxu0
        %v703 = vadd.f32 0.0, %v702
        %704 = vmatmul.f32.gmra.mxu0 %v593
        %v705 = vpop.f32.mrf.mxu0
        %v706 = vadd.f32 0.0, %v705
        %707 = vmatmul.f32.gmra.mxu0 %v596
        %v708 = vpop.f32.mrf.mxu0
        %v709 = vadd.f32 0.0, %v708
        %710 = vmatmul.f32.gmra.mxu0 %v599
        %v711 = vpop.f32.mrf.mxu0
        %v712 = vadd.f32 0.0, %v711
        %713 = vmatmul.f32.gmra.mxu0 %v602
        %v714 = vpop.f32.mrf.mxu0
        %v715 = vadd.f32 0.0, %v714
        %716 = vmatmul.f32.gmra.mxu0 %v605
        %v717 = vpop.f32.mrf.mxu0
        %v718 = vadd.f32 0.0, %v717
        %719 = vmatmul.f32.gmra.mxu0 %v608
        %v720 = vpop.f32.mrf.mxu0
        %v721 = vadd.f32 0.0, %v720
        %722 = vmatmul.f32.gmra.mxu0 %v611
        %v723 = vpop.f32.mrf.mxu0
        %v724 = vadd.f32 0.0, %v723
        %725 = vdwg.mxu0
        %726 = vmatpush.msra.mxu0 0.0
        %727 = vmatpush.msra.mxu0 0.0
        %728 = vmatpush.msra.mxu0 0.0
        %729 = vmatpush.msra.mxu0 0.0
        %730 = vmatpush.msra.mxu0 0.0
        %731 = vmatpush.msra.mxu0 0.0
        %732 = vmatpush.msra.mxu0 0.0
        %733 = vmatpush.msra.mxu0 0.0
        %734 = vmatpush.msra.mxu0 0.0
        %735 = vmatpush.msra.mxu0 0.0
        %736 = vmatpush.msra.mxu0 0.0
        %737 = vmatpush.msra.mxu0 0.0
        %738 = vmatpush.msra.mxu0 %v447
        %739 = vmatpush.msra.mxu0 %v444
        %740 = vmatpush.msra.mxu0 %v441
        %741 = vmatpush.msra.mxu0 %v438
        %742 = vmatmul.f32.gmra.mxu0 %v518
        %v743 = vpop.f32.mrf.mxu0
        %v744 = vadd.f32 0.0, %v743
        %745 = vmatmul.f32.gmra.mxu0 %v521
        %v746 = vpop.f32.mrf.mxu0
        %v747 = vadd.f32 0.0, %v746
        %748 = vmatmul.f32.gmra.mxu0 %v524
        %v749 = vpop.f32.mrf.mxu0
        %v750 = vadd.f32 0.0, %v749
        %751 = vmatmul.f32.gmra.mxu0 %v527
        %v752 = vpop.f32.mrf.mxu0
        %v753 = vadd.f32 0.0, %v752
        %754 = vmatmul.f32.gmra.mxu0 %v530
        %v755 = vpop.f32.mrf.mxu0
        %v756 = vadd.f32 0.0, %v755
        %757 = vmatmul.f32.gmra.mxu0 %v533
        %v758 = vpop.f32.mrf.mxu0
        %v759 = vadd.f32 0.0, %v758
        %760 = vmatmul.f32.gmra.mxu0 %v536
        %v761 = vpop.f32.mrf.mxu0
        %v762 = vadd.f32 0.0, %v761
        %763 = vmatmul.f32.gmra.mxu0 %v539
        %v764 = vpop.f32.mrf.mxu0
        %v765 = vadd.f32 0.0, %v764
        %766 = vmatmul.f32.gmra.mxu0 %v542
        %v767 = vpop.f32.mrf.mxu0
        %v768 = vadd.f32 0.0, %v767
        %769 = vmatmul.f32.gmra.mxu0 %v545
        %v770 = vpop.f32.mrf.mxu0
        %v771 = vadd.f32 0.0, %v770
        %772 = vmatmul.f32.gmra.mxu0 %v548
        %v773 = vpop.f32.mrf.mxu0
        %v774 = vadd.f32 0.0, %v773
        %775 = vmatmul.f32.gmra.mxu0 %v551
        %v776 = vpop.f32.mrf.mxu0
        %v777 = vadd.f32 0.0, %v776
        %778 = vmatmul.f32.gmra.mxu0 %v554
        %v779 = vpop.f32.mrf.mxu0
        %v780 = vadd.f32 0.0, %v779
        %781 = vmatmul.f32.gmra.mxu0 %v557
        %v782 = vpop.f32.mrf.mxu0
        %v783 = vadd.f32 0.0, %v782
        %784 = vmatmul.f32.gmra.mxu0 %v560
        %v785 = vpop.f32.mrf.mxu0
        %v786 = vadd.f32 0.0, %v785
        %787 = vmatmul.f32.gmra.mxu0 %v563
        %v788 = vpop.f32.mrf.mxu0
        %v789 = vadd.f32 0.0, %v788
        %790 = vmatmul.f32.gmra.mxu0 %v566
        %v791 = vpop.f32.mrf.mxu0
        %v792 = vadd.f32 0.0, %v791
        %793 = vmatmul.f32.gmra.mxu0 %v569
        %v794 = vpop.f32.mrf.mxu0
        %v795 = vadd.f32 0.0, %v794
        %796 = vmatmul.f32.gmra.mxu0 %v572
        %v797 = vpop.f32.mrf.mxu0
        %v798 = vadd.f32 0.0, %v797
        %799 = vmatmul.f32.gmra.mxu0 %v575
        %v800 = vpop.f32.mrf.mxu0
        %v801 = vadd.f32 0.0, %v800
        %802 = vmatmul.f32.gmra.mxu0 %v578
        %v803 = vpop.f32.mrf.mxu0
        %v804 = vadd.f32 0.0, %v803
        %805 = vmatmul.f32.gmra.mxu0 %v581
        %v806 = vpop.f32.mrf.mxu0
        %v807 = vadd.f32 0.0, %v806
        %808 = vmatmul.f32.gmra.mxu0 %v584
        %v809 = vpop.f32.mrf.mxu0
        %v810 = vadd.f32 0.0, %v809
        %811 = vmatmul.f32.gmra.mxu0 %v587
        %v812 = vpop.f32.mrf.mxu0
        %v813 = vadd.f32 0.0, %v812
        %814 = vmatmul.f32.gmra.mxu0 %v590
        %v815 = vpop.f32.mrf.mxu0
        %v816 = vadd.f32 0.0, %v815
        %817 = vmatmul.f32.gmra.mxu0 %v593
        %v818 = vpop.f32.mrf.mxu0
        %v819 = vadd.f32 0.0, %v818
        %820 = vmatmul.f32.gmra.mxu0 %v596
        %v821 = vpop.f32.mrf.mxu0
        %v822 = vadd.f32 0.0, %v821
        %823 = vmatmul.f32.gmra.mxu0 %v599
        %v824 = vpop.f32.mrf.mxu0
        %v825 = vadd.f32 0.0, %v824
        %826 = vmatmul.f32.gmra.mxu0 %v602
        %v827 = vpop.f32.mrf.mxu0
        %v828 = vadd.f32 0.0, %v827
        %829 = vmatmul.f32.gmra.mxu0 %v605
        %v830 = vpop.f32.mrf.mxu0
        %v831 = vadd.f32 0.0, %v830
        %832 = vmatmul.f32.gmra.mxu0 %v608
        %v833 = vpop.f32.mrf.mxu0
        %v834 = vadd.f32 0.0, %v833
        %835 = vmatmul.f32.gmra.mxu0 %v611
        %v836 = vpop.f32.mrf.mxu0
        %v837 = vadd.f32 0.0, %v836
        %838 = vdwg.mxu0
        %v839 = vmax.f32 %v631, %v744
        %840 = vmax.xlane.f32.xlu0 %v839
        %v841 = vpop.xlane.xlu0 %840
        %v842 = vmax.f32 %v634, %v747
        %843 = vmax.xlane.f32.xlu0 %v842
        %v844 = vpop.xlane.xlu0 %843
        %v845 = vmax.f32 %v637, %v750
        %846 = vmax.xlane.f32.xlu0 %v845
        %v847 = vpop.xlane.xlu0 %846
        %v848 = vmax.f32 %v640, %v753
        %849 = vmax.xlane.f32.xlu0 %v848
        %v850 = vpop.xlane.xlu0 %849
        %v851 = vmax.f32 %v643, %v756
        %852 = vmax.xlane.f32.xlu0 %v851
        %v853 = vpop.xlane.xlu0 %852
        %v854 = vmax.f32 %v646, %v759
        %855 = vmax.xlane.f32.xlu0 %v854
        %v856 = vpop.xlane.xlu0 %855
        %v857 = vmax.f32 %v649, %v762
        %858 = vmax.xlane.f32.xlu0 %v857
        %v859 = vpop.xlane.xlu0 %858
        %v860 = vmax.f32 %v652, %v765
        %861 = vmax.xlane.f32.xlu0 %v860
        %v862 = vpop.xlane.xlu0 %861
        %v863 = vmax.f32 %v655, %v768
        %864 = vmax.xlane.f32.xlu0 %v863
        %v865 = vpop.xlane.xlu0 %864
        %v866 = vmax.f32 %v658, %v771
        %867 = vmax.xlane.f32.xlu0 %v866
        %v868 = vpop.xlane.xlu0 %867
        %v869 = vmax.f32 %v661, %v774
        %870 = vmax.xlane.f32.xlu0 %v869
        %v871 = vpop.xlane.xlu0 %870
        %v872 = vmax.f32 %v664, %v777
        %873 = vmax.xlane.f32.xlu0 %v872
        %v874 = vpop.xlane.xlu0 %873
        %v875 = vmax.f32 %v667, %v780
        %876 = vmax.xlane.f32.xlu0 %v875
        %v877 = vpop.xlane.xlu0 %876
        %v878 = vmax.f32 %v670, %v783
        %879 = vmax.xlane.f32.xlu0 %v878
        %v880 = vpop.xlane.xlu0 %879
        %v881 = vmax.f32 %v673, %v786
        %882 = vmax.xlane.f32.xlu0 %v881
        %v883 = vpop.xlane.xlu0 %882
        %v884 = vmax.f32 %v676, %v789
        %885 = vmax.xlane.f32.xlu0 %v884
        %v886 = vpop.xlane.xlu0 %885
        %v887 = vmax.f32 %v679, %v792
        %888 = vmax.xlane.f32.xlu0 %v887
        %v889 = vpop.xlane.xlu0 %888
        %v890 = vmax.f32 %v682, %v795
        %891 = vmax.xlane.f32.xlu0 %v890
        %v892 = vpop.xlane.xlu0 %891
        %v893 = vmax.f32 %v685, %v798
        %894 = vmax.xlane.f32.xlu0 %v893
        %v895 = vpop.xlane.xlu0 %894
        %v896 = vmax.f32 %v688, %v801
        %897 = vmax.xlane.f32.xlu0 %v896
        %v898 = vpop.xlane.xlu0 %897
        %v899 = vmax.f32 %v691, %v804
        %900 = vmax.xlane.f32.xlu0 %v899
        %v901 = vpop.xlane.xlu0 %900
        %v902 = vmax.f32 %v694, %v807
        %903 = vmax.xlane.f32.xlu0 %v902
        %v904 = vpop.xlane.xlu0 %903
        %v905 = vmax.f32 %v697, %v810
        %906 = vmax.xlane.f32.xlu0 %v905
        %v907 = vpop.xlane.xlu0 %906
        %v908 = vmax.f32 %v700, %v813
        %909 = vmax.xlane.f32.xlu0 %v908
        %v910 = vpop.xlane.xlu0 %909
        %v911 = vmax.f32 %v703, %v816
        %912 = vmax.xlane.f32.xlu0 %v911
        %v913 = vpop.xlane.xlu0 %912
        %v914 = vmax.f32 %v706, %v819
        %915 = vmax.xlane.f32.xlu0 %v914
        %v916 = vpop.xlane.xlu0 %915
        %v917 = vmax.f32 %v709, %v822
        %918 = vmax.xlane.f32.xlu0 %v917
        %v919 = vpop.xlane.xlu0 %918
        %v920 = vmax.f32 %v712, %v825
        %921 = vmax.xlane.f32.xlu0 %v920
        %v922 = vpop.xlane.xlu0 %921
        %v923 = vmax.f32 %v715, %v828
        %924 = vmax.xlane.f32.xlu0 %v923
        %v925 = vpop.xlane.xlu0 %924
        %v926 = vmax.f32 %v718, %v831
        %927 = vmax.xlane.f32.xlu0 %v926
        %v928 = vpop.xlane.xlu0 %927
        %v929 = vmax.f32 %v721, %v834
        %930 = vmax.xlane.f32.xlu0 %v929
        %v931 = vpop.xlane.xlu0 %930
        %v932 = vmax.f32 %v724, %v837
        %933 = vmax.xlane.f32.xlu0 %v932
        %v934 = vpop.xlane.xlu0 %933
        %v935 = vsub.f32 %v631, %v841
        %v936 = vsub.f32 %v744, %v841
        %v937 = vsub.f32 %v634, %v844
        %v938 = vsub.f32 %v747, %v844
        %v939 = vsub.f32 %v637, %v847
        %v940 = vsub.f32 %v750, %v847
        %v941 = vsub.f32 %v640, %v850
        %v942 = vsub.f32 %v753, %v850
        %v943 = vsub.f32 %v643, %v853
        %v944 = vsub.f32 %v756, %v853
        %v945 = vsub.f32 %v646, %v856
        %v946 = vsub.f32 %v759, %v856
        %v947 = vsub.f32 %v649, %v859
        %v948 = vsub.f32 %v762, %v859
        %v949 = vsub.f32 %v652, %v862
        %v950 = vsub.f32 %v765, %v862
        %v951 = vsub.f32 %v655, %v865
        %v952 = vsub.f32 %v768, %v865
        %v953 = vsub.f32 %v658, %v868
        %v954 = vsub.f32 %v771, %v868
        %v955 = vsub.f32 %v661, %v871
        %v956 = vsub.f32 %v774, %v871
        %v957 = vsub.f32 %v664, %v874
        %v958 = vsub.f32 %v777, %v874
        %v959 = vsub.f32 %v667, %v877
        %v960 = vsub.f32 %v780, %v877
        %v961 = vsub.f32 %v670, %v880
        %v962 = vsub.f32 %v783, %v880
        %v963 = vsub.f32 %v673, %v883
        %v964 = vsub.f32 %v786, %v883
        %v965 = vsub.f32 %v676, %v886
        %v966 = vsub.f32 %v789, %v886
        %v967 = vsub.f32 %v679, %v889
        %v968 = vsub.f32 %v792, %v889
        %v969 = vsub.f32 %v682, %v892
        %v970 = vsub.f32 %v795, %v892
        %v971 = vsub.f32 %v685, %v895
        %v972 = vsub.f32 %v798, %v895
        %v973 = vsub.f32 %v688, %v898
        %v974 = vsub.f32 %v801, %v898
        %v975 = vsub.f32 %v691, %v901
        %v976 = vsub.f32 %v804, %v901
        %v977 = vsub.f32 %v694, %v904
        %v978 = vsub.f32 %v807, %v904
        %v979 = vsub.f32 %v697, %v907
        %v980 = vsub.f32 %v810, %v907
        %v981 = vsub.f32 %v700, %v910
        %v982 = vsub.f32 %v813, %v910
        %v983 = vsub.f32 %v703, %v913
        %v984 = vsub.f32 %v816, %v913
        %v985 = vsub.f32 %v706, %v916
        %v986 = vsub.f32 %v819, %v916
        %v987 = vsub.f32 %v709, %v919
        %v988 = vsub.f32 %v822, %v919
        %v989 = vsub.f32 %v712, %v922
        %v990 = vsub.f32 %v825, %v922
        %v991 = vsub.f32 %v715, %v925
        %v992 = vsub.f32 %v828, %v925
        %v993 = vsub.f32 %v718, %v928
        %v994 = vsub.f32 %v831, %v928
        %v995 = vsub.f32 %v721, %v931
        %v996 = vsub.f32 %v834, %v931
        %v997 = vsub.f32 %v724, %v934
        %v998 = vsub.f32 %v837, %v934
        %v999 = vmul.f32 %v935, 1.442695
        %v1000 = vpow.pop %v999
        %v1001 = vmul.f32 %v936, 1.442695
        %v1002 = vpow.pop %v1001
        %v1003 = vmul.f32 %v937, 1.442695
        %v1004 = vpow.pop %v1003
        %v1005 = vmul.f32 %v938, 1.442695
        %v1006 = vpow.pop %v1005
        %v1007 = vmul.f32 %v939, 1.442695
        %v1008 = vpow.pop %v1007
        %v1009 = vmul.f32 %v940, 1.442695
        %v1010 = vpow.pop %v1009
        %v1011 = vmul.f32 %v941, 1.442695
        %v1012 = vpow.pop %v1011
        %v1013 = vmul.f32 %v942, 1.442695
        %v1014 = vpow.pop %v1013
        %v1015 = vmul.f32 %v943, 1.442695
        %v1016 = vpow.pop %v1015
        %v1017 = vmul.f32 %v944, 1.442695
        %v1018 = vpow.pop %v1017
        %v1019 = vmul.f32 %v945, 1.442695
        %v1020 = vpow.pop %v1019
        %v1021 = vmul.f32 %v946, 1.442695
        %v1022 = vpow.pop %v1021
        %v1023 = vmul.f32 %v947, 1.442695
        %v1024 = vpow.pop %v1023
        %v1025 = vmul.f32 %v948, 1.442695
        %v1026 = vpow.pop %v1025
        %v1027 = vmul.f32 %v949, 1.442695
        %v1028 = vpow.pop %v1027
        %v1029 = vmul.f32 %v950, 1.442695
        %v1030 = vpow.pop %v1029
        %v1031 = vmul.f32 %v951, 1.442695
        %v1032 = vpow.pop %v1031
        %v1033 = vmul.f32 %v952, 1.442695
        %v1034 = vpow.pop %v1033
        %v1035 = vmul.f32 %v953, 1.442695
        %v1036 = vpow.pop %v1035
        %v1037 = vmul.f32 %v954, 1.442695
        %v1038 = vpow.pop %v1037
        %v1039 = vmul.f32 %v955, 1.442695
        %v1040 = vpow.pop %v1039
        %v1041 = vmul.f32 %v956, 1.442695
        %v1042 = vpow.pop %v1041
        %v1043 = vmul.f32 %v957, 1.442695
        %v1044 = vpow.pop %v1043
        %v1045 = vmul.f32 %v958, 1.442695
        %v1046 = vpow.pop %v1045
        %v1047 = vmul.f32 %v959, 1.442695
        %v1048 = vpow.pop %v1047
        %v1049 = vmul.f32 %v960, 1.442695
        %v1050 = vpow.pop %v1049
        %v1051 = vmul.f32 %v961, 1.442695
        %v1052 = vpow.pop %v1051
        %v1053 = vmul.f32 %v962, 1.442695
        %v1054 = vpow.pop %v1053
        %v1055 = vmul.f32 %v963, 1.442695
        %v1056 = vpow.pop %v1055
        %v1057 = vmul.f32 %v964, 1.442695
        %v1058 = vpow.pop %v1057
        %v1059 = vmul.f32 %v965, 1.442695
        %v1060 = vpow.pop %v1059
        %v1061 = vmul.f32 %v966, 1.442695
        %v1062 = vpow.pop %v1061
        %v1063 = vmul.f32 %v967, 1.442695
        %v1064 = vpow.pop %v1063
        %v1065 = vmul.f32 %v968, 1.442695
        %v1066 = vpow.pop %v1065
        %v1067 = vmul.f32 %v969, 1.442695
        %v1068 = vpow.pop %v1067
        %v1069 = vmul.f32 %v970, 1.442695
        %v1070 = vpow.pop %v1069
        %v1071 = vmul.f32 %v971, 1.442695
        %v1072 = vpow.pop %v1071
        %v1073 = vmul.f32 %v972, 1.442695
        %v1074 = vpow.pop %v1073
        %v1075 = vmul.f32 %v973, 1.442695
        %v1076 = vpow.pop %v1075
        %v1077 = vmul.f32 %v974, 1.442695
        %v1078 = vpow.pop %v1077
        %v1079 = vmul.f32 %v975, 1.442695
        %v1080 = vpow.pop %v1079
        %v1081 = vmul.f32 %v976, 1.442695
        %v1082 = vpow.pop %v1081
        %v1083 = vmul.f32 %v977, 1.442695
        %v1084 = vpow.pop %v1083
        %v1085 = vmul.f32 %v978, 1.442695
        %v1086 = vpow.pop %v1085
        %v1087 = vmul.f32 %v979, 1.442695
        %v1088 = vpow.pop %v1087
        %v1089 = vmul.f32 %v980, 1.442695
        %v1090 = vpow.pop %v1089
        %v1091 = vmul.f32 %v981, 1.442695
        %v1092 = vpow.pop %v1091
        %v1093 = vmul.f32 %v982, 1.442695
        %v1094 = vpow.pop %v1093
        %v1095 = vmul.f32 %v983, 1.442695
        %v1096 = vpow.pop %v1095
        %v1097 = vmul.f32 %v984, 1.442695
        %v1098 = vpow.pop %v1097
        %v1099 = vmul.f32 %v985, 1.442695
        %v1100 = vpow.pop %v1099
        %v1101 = vmul.f32 %v986, 1.442695
        %v1102 = vpow.pop %v1101
        %v1103 = vmul.f32 %v987, 1.442695
        %v1104 = vpow.pop %v1103
        %v1105 = vmul.f32 %v988, 1.442695
        %v1106 = vpow.pop %v1105
        %v1107 = vmul.f32 %v989, 1.442695
        %v1108 = vpow.pop %v1107
        %v1109 = vmul.f32 %v990, 1.442695
        %v1110 = vpow.pop %v1109
        %v1111 = vmul.f32 %v991, 1.442695
        %v1112 = vpow.pop %v1111
        %v1113 = vmul.f32 %v992, 1.442695
        %v1114 = vpow.pop %v1113
        %v1115 = vmul.f32 %v993, 1.442695
        %v1116 = vpow.pop %v1115
        %v1117 = vmul.f32 %v994, 1.442695
        %v1118 = vpow.pop %v1117
        %v1119 = vmul.f32 %v995, 1.442695
        %v1120 = vpow.pop %v1119
        %v1121 = vmul.f32 %v996, 1.442695
        %v1122 = vpow.pop %v1121
        %v1123 = vmul.f32 %v997, 1.442695
        %v1124 = vpow.pop %v1123
        %v1125 = vmul.f32 %v998, 1.442695
        %v1126 = vpow.pop %v1125
        %v1127 = vadd.f32 %v1000, %v1002
        %1128 = vadd.xlane.f32.xlu0 %v1127
        %v1129 = vpop.xlane.xlu0 %1128
        %v1130 = vadd.f32 %v1004, %v1006
        %1131 = vadd.xlane.f32.xlu0 %v1130
        %v1132 = vpop.xlane.xlu0 %1131
        %v1133 = vadd.f32 %v1008, %v1010
        %1134 = vadd.xlane.f32.xlu0 %v1133
        %v1135 = vpop.xlane.xlu0 %1134
        %v1136 = vadd.f32 %v1012, %v1014
        %1137 = vadd.xlane.f32.xlu0 %v1136
        %v1138 = vpop.xlane.xlu0 %1137
        %v1139 = vadd.f32 %v1016, %v1018
        %1140 = vadd.xlane.f32.xlu0 %v1139
        %v1141 = vpop.xlane.xlu0 %1140
        %v1142 = vadd.f32 %v1020, %v1022
        %1143 = vadd.xlane.f32.xlu0 %v1142
        %v1144 = vpop.xlane.xlu0 %1143
        %v1145 = vadd.f32 %v1024, %v1026
        %1146 = vadd.xlane.f32.xlu0 %v1145
        %v1147 = vpop.xlane.xlu0 %1146
        %v1148 = vadd.f32 %v1028, %v1030
        %1149 = vadd.xlane.f32.xlu0 %v1148
        %v1150 = vpop.xlane.xlu0 %1149
        %v1151 = vadd.f32 %v1032, %v1034
        %1152 = vadd.xlane.f32.xlu0 %v1151
        %v1153 = vpop.xlane.xlu0 %1152
        %v1154 = vadd.f32 %v1036, %v1038
        %1155 = vadd.xlane.f32.xlu0 %v1154
        %v1156 = vpop.xlane.xlu0 %1155
        %v1157 = vadd.f32 %v1040, %v1042
        %1158 = vadd.xlane.f32.xlu0 %v1157
        %v1159 = vpop.xlane.xlu0 %1158
        %v1160 = vadd.f32 %v1044, %v1046
        %1161 = vadd.xlane.f32.xlu0 %v1160
        %v1162 = vpop.xlane.xlu0 %1161
        %v1163 = vadd.f32 %v1048, %v1050
        %1164 = vadd.xlane.f32.xlu0 %v1163
        %v1165 = vpop.xlane.xlu0 %1164
        %v1166 = vadd.f32 %v1052, %v1054
        %1167 = vadd.xlane.f32.xlu0 %v1166
        %v1168 = vpop.xlane.xlu0 %1167
        %v1169 = vadd.f32 %v1056, %v1058
        %1170 = vadd.xlane.f32.xlu0 %v1169
        %v1171 = vpop.xlane.xlu0 %1170
        %v1172 = vadd.f32 %v1060, %v1062
        %1173 = vadd.xlane.f32.xlu0 %v1172
        %v1174 = vpop.xlane.xlu0 %1173
        %v1175 = vadd.f32 %v1064, %v1066
        %1176 = vadd.xlane.f32.xlu0 %v1175
        %v1177 = vpop.xlane.xlu0 %1176
        %v1178 = vadd.f32 %v1068, %v1070
        %1179 = vadd.xlane.f32.xlu0 %v1178
        %v1180 = vpop.xlane.xlu0 %1179
        %v1181 = vadd.f32 %v1072, %v1074
        %1182 = vadd.xlane.f32.xlu0 %v1181
        %v1183 = vpop.xlane.xlu0 %1182
        %v1184 = vadd.f32 %v1076, %v1078
        %1185 = vadd.xlane.f32.xlu0 %v1184
        %v1186 = vpop.xlane.xlu0 %1185
        %v1187 = vadd.f32 %v1080, %v1082
        %1188 = vadd.xlane.f32.xlu0 %v1187
        %v1189 = vpop.xlane.xlu0 %1188
        %v1190 = vadd.f32 %v1084, %v1086
        %1191 = vadd.xlane.f32.xlu0 %v1190
        %v1192 = vpop.xlane.xlu0 %1191
        %v1193 = vadd.f32 %v1088, %v1090
        %1194 = vadd.xlane.f32.xlu0 %v1193
        %v1195 = vpop.xlane.xlu0 %1194
        %v1196 = vadd.f32 %v1092, %v1094
        %1197 = vadd.xlane.f32.xlu0 %v1196
        %v1198 = vpop.xlane.xlu0 %1197
        %v1199 = vadd.f32 %v1096, %v1098
        %1200 = vadd.xlane.f32.xlu0 %v1199
        %v1201 = vpop.xlane.xlu0 %1200
        %v1202 = vadd.f32 %v1100, %v1102
        %1203 = vadd.xlane.f32.xlu0 %v1202
        %v1204 = vpop.xlane.xlu0 %1203
        %v1205 = vadd.f32 %v1104, %v1106
        %1206 = vadd.xlane.f32.xlu0 %v1205
        %v1207 = vpop.xlane.xlu0 %1206
        %v1208 = vadd.f32 %v1108, %v1110
        %1209 = vadd.xlane.f32.xlu0 %v1208
        %v1210 = vpop.xlane.xlu0 %1209
        %v1211 = vadd.f32 %v1112, %v1114
        %1212 = vadd.xlane.f32.xlu0 %v1211
        %v1213 = vpop.xlane.xlu0 %1212
        %v1214 = vadd.f32 %v1116, %v1118
        %1215 = vadd.xlane.f32.xlu0 %v1214
        %v1216 = vpop.xlane.xlu0 %1215
        %v1217 = vadd.f32 %v1120, %v1122
        %1218 = vadd.xlane.f32.xlu0 %v1217
        %v1219 = vpop.xlane.xlu0 %1218
        %v1220 = vadd.f32 %v1124, %v1126
        %1221 = vadd.xlane.f32.xlu0 %v1220
        %v1222 = vpop.xlane.xlu0 %1221
        %v1223 = vrcp.pop %v1129
        %v1224 = vrcp.pop %v1132
        %v1225 = vrcp.pop %v1135
        %v1226 = vrcp.pop %v1138
        %v1227 = vrcp.pop %v1141
        %v1228 = vrcp.pop %v1144
        %v1229 = vrcp.pop %v1147
        %v1230 = vrcp.pop %v1150
        %v1231 = vrcp.pop %v1153
        %v1232 = vrcp.pop %v1156
        %v1233 = vrcp.pop %v1159
        %v1234 = vrcp.pop %v1162
        %v1235 = vrcp.pop %v1165
        %v1236 = vrcp.pop %v1168
        %v1237 = vrcp.pop %v1171
        %v1238 = vrcp.pop %v1174
        %v1239 = vrcp.pop %v1177
        %v1240 = vrcp.pop %v1180
        %v1241 = vrcp.pop %v1183
        %v1242 = vrcp.pop %v1186
        %v1243 = vrcp.pop %v1189
        %v1244 = vrcp.pop %v1192
        %v1245 = vrcp.pop %v1195
        %v1246 = vrcp.pop %v1198
        %v1247 = vrcp.pop %v1201
        %v1248 = vrcp.pop %v1204
        %v1249 = vrcp.pop %v1207
        %v1250 = vrcp.pop %v1210
        %v1251 = vrcp.pop %v1213
        %v1252 = vrcp.pop %v1216
        %v1253 = vrcp.pop %v1219
        %v1254 = vrcp.pop %v1222
        %v1255 = vmul.f32 %v1000, %v1223
        %v1256 = vmul.f32 %v1002, %v1223
        %v1257 = vmul.f32 %v1004, %v1224
        %v1258 = vmul.f32 %v1006, %v1224
        %v1259 = vmul.f32 %v1008, %v1225
        %v1260 = vmul.f32 %v1010, %v1225
        %v1261 = vmul.f32 %v1012, %v1226
        %v1262 = vmul.f32 %v1014, %v1226
        %v1263 = vmul.f32 %v1016, %v1227
        %v1264 = vmul.f32 %v1018, %v1227
        %v1265 = vmul.f32 %v1020, %v1228
        %v1266 = vmul.f32 %v1022, %v1228
        %v1267 = vmul.f32 %v1024, %v1229
        %v1268 = vmul.f32 %v1026, %v1229
        %v1269 = vmul.f32 %v1028, %v1230
        %v1270 = vmul.f32 %v1030, %v1230
        %v1271 = vmul.f32 %v1032, %v1231
        %v1272 = vmul.f32 %v1034, %v1231
        %v1273 = vmul.f32 %v1036, %v1232
        %v1274 = vmul.f32 %v1038, %v1232
        %v1275 = vmul.f32 %v1040, %v1233
        %v1276 = vmul.f32 %v1042, %v1233
        %v1277 = vmul.f32 %v1044, %v1234
        %v1278 = vmul.f32 %v1046, %v1234
        %v1279 = vmul.f32 %v1048, %v1235
        %v1280 = vmul.f32 %v1050, %v1235
        %v1281 = vmul.f32 %v1052, %v1236
        %v1282 = vmul.f32 %v1054, %v1236
        %v1283 = vmul.f32 %v1056, %v1237
        %v1284 = vmul.f32 %v1058, %v1237
        %v1285 = vmul.f32 %v1060, %v1238
        %v1286 = vmul.f32 %v1062, %v1238
        %v1287 = vmul.f32 %v1064, %v1239
        %v1288 = vmul.f32 %v1066, %v1239
        %v1289 = vmul.f32 %v1068, %v1240
        %v1290 = vmul.f32 %v1070, %v1240
        %v1291 = vmul.f32 %v1072, %v1241
        %v1292 = vmul.f32 %v1074, %v1241
        %v1293 = vmul.f32 %v1076, %v1242
        %v1294 = vmul.f32 %v1078, %v1242
        %v1295 = vmul.f32 %v1080, %v1243
        %v1296 = vmul.f32 %v1082, %v1243
        %v1297 = vmul.f32 %v1084, %v1244
        %v1298 = vmul.f32 %v1086, %v1244
        %v1299 = vmul.f32 %v1088, %v1245
        %v1300 = vmul.f32 %v1090, %v1245
        %v1301 = vmul.f32 %v1092, %v1246
        %v1302 = vmul.f32 %v1094, %v1246
        %v1303 = vmul.f32 %v1096, %v1247
        %v1304 = vmul.f32 %v1098, %v1247
        %v1305 = vmul.f32 %v1100, %v1248
        %v1306 = vmul.f32 %v1102, %v1248
        %v1307 = vmul.f32 %v1104, %v1249
        %v1308 = vmul.f32 %v1106, %v1249
        %v1309 = vmul.f32 %v1108, %v1250
        %v1310 = vmul.f32 %v1110, %v1250
        %v1311 = vmul.f32 %v1112, %v1251
        %v1312 = vmul.f32 %v1114, %v1251
        %v1313 = vmul.f32 %v1116, %v1252
        %v1314 = vmul.f32 %v1118, %v1252
        %v1315 = vmul.f32 %v1120, %v1253
        %v1316 = vmul.f32 %v1122, %v1253
        %v1317 = vmul.f32 %v1124, %v1254
        %v1318 = vmul.f32 %v1126, %v1254
        %1319 = vmatpush.xpose.msra.mxu0 %v1285
        %1320 = vmatpush.xpose.msra.mxu0 %v1283
        %1321 = vmatpush.xpose.msra.mxu0 %v1281
        %1322 = vmatpush.xpose.msra.mxu0 %v1279
        %1323 = vmatpush.xpose.msra.mxu0 %v1277
        %1324 = vmatpush.xpose.msra.mxu0 %v1275
        %1325 = vmatpush.xpose.msra.mxu0 %v1273
        %1326 = vmatpush.xpose.msra.mxu0 %v1271
        %1327 = vmatpush.xpose.msra.mxu0 %v1269
        %1328 = vmatpush.xpose.msra.mxu0 %v1267
        %1329 = vmatpush.xpose.msra.mxu0 %v1265
        %1330 = vmatpush.xpose.msra.mxu0 %v1263
        %1331 = vmatpush.xpose.msra.mxu0 %v1261
        %1332 = vmatpush.xpose.msra.mxu0 %v1259
        %1333 = vmatpush.xpose.msra.mxu0 %v1257
        %1334 = vmatpush.xpose.msra.mxu0 %v1255
        %1335 = vmatmul.f32.gmra.mxu0 %v406
        %v1336 = vpop.f32.mrf.mxu0
        %v1337 = vadd.f32 0.0, %v1336
        %1338 = vdwg.mxu0
        %1339 = vmatpush.xpose.msra.mxu0 %v1286
        %1340 = vmatpush.xpose.msra.mxu0 %v1284
        %1341 = vmatpush.xpose.msra.mxu0 %v1282
        %1342 = vmatpush.xpose.msra.mxu0 %v1280
        %1343 = vmatpush.xpose.msra.mxu0 %v1278
        %1344 = vmatpush.xpose.msra.mxu0 %v1276
        %1345 = vmatpush.xpose.msra.mxu0 %v1274
        %1346 = vmatpush.xpose.msra.mxu0 %v1272
        %1347 = vmatpush.xpose.msra.mxu0 %v1270
        %1348 = vmatpush.xpose.msra.mxu0 %v1268
        %1349 = vmatpush.xpose.msra.mxu0 %v1266
        %1350 = vmatpush.xpose.msra.mxu0 %v1264
        %1351 = vmatpush.xpose.msra.mxu0 %v1262
        %1352 = vmatpush.xpose.msra.mxu0 %v1260
        %1353 = vmatpush.xpose.msra.mxu0 %v1258
        %1354 = vmatpush.xpose.msra.mxu0 %v1256
        %1355 = vmatmul.f32.gmra.mxu0 %v450
        %v1356 = vpop.f32.mrf.mxu0
        %v1357 = vadd.f32 %v1337, %v1356
        %1358 = vdwg.mxu0
        %1359 = vmatpush.xpose.msra.mxu0 %v1317
        %1360 = vmatpush.xpose.msra.mxu0 %v1315
        %1361 = vmatpush.xpose.msra.mxu0 %v1313
        %1362 = vmatpush.xpose.msra.mxu0 %v1311
        %1363 = vmatpush.xpose.msra.mxu0 %v1309
        %1364 = vmatpush.xpose.msra.mxu0 %v1307
        %1365 = vmatpush.xpose.msra.mxu0 %v1305
        %1366 = vmatpush.xpose.msra.mxu0 %v1303
        %1367 = vmatpush.xpose.msra.mxu0 %v1301
        %1368 = vmatpush.xpose.msra.mxu0 %v1299
        %1369 = vmatpush.xpose.msra.mxu0 %v1297
        %1370 = vmatpush.xpose.msra.mxu0 %v1295
        %1371 = vmatpush.xpose.msra.mxu0 %v1293
        %1372 = vmatpush.xpose.msra.mxu0 %v1291
        %1373 = vmatpush.xpose.msra.mxu0 %v1289
        %1374 = vmatpush.xpose.msra.mxu0 %v1287
        %1375 = vmatmul.f32.gmra.mxu0 %v406
        %v1376 = vpop.f32.mrf.mxu0
        %v1377 = vadd.f32 0.0, %v1376
        %1378 = vdwg.mxu0
        %1379 = vmatpush.xpose.msra.mxu0 %v1318
        %1380 = vmatpush.xpose.msra.mxu0 %v1316
        %1381 = vmatpush.xpose.msra.mxu0 %v1314
        %1382 = vmatpush.xpose.msra.mxu0 %v1312
        %1383 = vmatpush.xpose.msra.mxu0 %v1310
        %1384 = vmatpush.xpose.msra.mxu0 %v1308
        %1385 = vmatpush.xpose.msra.mxu0 %v1306
        %1386 = vmatpush.xpose.msra.mxu0 %v1304
        %1387 = vmatpush.xpose.msra.mxu0 %v1302
        %1388 = vmatpush.xpose.msra.mxu0 %v1300
        %1389 = vmatpush.xpose.msra.mxu0 %v1298
        %1390 = vmatpush.xpose.msra.mxu0 %v1296
        %1391 = vmatpush.xpose.msra.mxu0 %v1294
        %1392 = vmatpush.xpose.msra.mxu0 %v1292
        %1393 = vmatpush.xpose.msra.mxu0 %v1290
        %1394 = vmatpush.xpose.msra.mxu0 %v1288
        %1395 = vmatmul.f32.gmra.mxu0 %v450
        %v1396 = vpop.f32.mrf.mxu0
        %v1397 = vadd.f32 %v1377, %v1396
        %1398 = vdwg.mxu0
        %v1399 = vld [vmem:[%s3] sm:$0xf]
        %v1400 = vld [vmem:[%s4] sm:$0xf]
        %1402 = vset.pattern.permute.xlu0 0
        %1403 = vperm.xlu0 %1402, %v1400
        %v1404 = vpop.permute.xlu0 %1403
        %v1407 = vsel %vm331, %v1399, 0
        %v1410 = vsel %vm359, %v1357, 0
        %v1413 = vsel %vm359, %v1397, 0
        %1415 = vmatpush.msra.mxu0 0.0
        %1416 = vmatpush.msra.mxu0 0.0
        %1417 = vmatpush.msra.mxu0 0.0
        %1418 = vmatpush.msra.mxu0 0.0
        %1419 = vmatpush.msra.mxu0 0.0
        %1420 = vmatpush.msra.mxu0 0.0
        %1421 = vmatpush.msra.mxu0 0.0
        %1422 = vmatpush.msra.mxu0 0.0
        %1423 = vmatpush.msra.mxu0 0.0
        %1424 = vmatpush.msra.mxu0 0.0
        %1425 = vmatpush.msra.mxu0 0.0
        %1426 = vmatpush.msra.mxu0 0.0
        %1427 = vmatpush.msra.mxu0 0.0
        %1428 = vmatpush.msra.mxu0 0.0
        %1429 = vmatpush.msra.mxu0 0.0
        %1430 = vmatpush.msra.mxu0 %v1410
        %1431 = vmatmul.f32.gmra.mxu0 %v1407
        %v1432 = vpop.f32.mrf.mxu0
        %v1433 = vadd.f32 %v1404, %v1432
        %1434 = vdwg.mxu0
        %1435 = vmatpush.msra.mxu0 0.0
        %1436 = vmatpush.msra.mxu0 0.0
        %1437 = vmatpush.msra.mxu0 0.0
        %1438 = vmatpush.msra.mxu0 0.0
        %1439 = vmatpush.msra.mxu0 0.0
        %1440 = vmatpush.msra.mxu0 0.0
        %1441 = vmatpush.msra.mxu0 0.0
        %1442 = vmatpush.msra.mxu0 0.0
        %1443 = vmatpush.msra.mxu0 0.0
        %1444 = vmatpush.msra.mxu0 0.0
        %1445 = vmatpush.msra.mxu0 0.0
        %1446 = vmatpush.msra.mxu0 0.0
        %1447 = vmatpush.msra.mxu0 0.0
        %1448 = vmatpush.msra.mxu0 0.0
        %1449 = vmatpush.msra.mxu0 0.0
        %1450 = vmatpush.msra.mxu0 %v1413
        %1451 = vmatmul.f32.gmra.mxu0 %v1407
        %v1452 = vpop.f32.mrf.mxu0
        %v1453 = vadd.f32 %v1404, %v1452
        %1454 = vdwg.mxu0
        %v1457 = vrot.slane %v1453, 4
        %v1458 = vsel %vm359, %v1433, %v1457
        %1460 = vst [vmem:[%s262] sm:$0xff] %v1458
        %1461 = vst [vmem:[%s252] sm:$0xff] %v1255
        %1462 = vst [vmem:[%s252 + $0x8] sm:$0xff] %v1256
        %1463 = vst [vmem:[%s252 + $0x10] sm:$0xff] %v1257
        %1464 = vst [vmem:[%s252 + $0x18] sm:$0xff] %v1258
        %1465 = vst [vmem:[%s252 + $0x20] sm:$0xff] %v1259
        %1466 = vst [vmem:[%s252 + $0x28] sm:$0xff] %v1260
        %1467 = vst [vmem:[%s252 + $0x30] sm:$0xff] %v1261
        %1468 = vst [vmem:[%s252 + $0x38] sm:$0xff] %v1262
        %1469 = vst [vmem:[%s252 + $0x40] sm:$0xff] %v1263
        %1470 = vst [vmem:[%s252 + $0x48] sm:$0xff] %v1264
        %1471 = vst [vmem:[%s252 + $0x50] sm:$0xff] %v1265
        %1472 = vst [vmem:[%s252 + $0x58] sm:$0xff] %v1266
        %1473 = vst [vmem:[%s252 + $0x60] sm:$0xff] %v1267
        %1474 = vst [vmem:[%s252 + $0x68] sm:$0xff] %v1268
        %1475 = vst [vmem:[%s252 + $0x70] sm:$0xff] %v1269
        %1476 = vst [vmem:[%s252 + $0x78] sm:$0xff] %v1270
        %1477 = vst [vmem:[%s252 + $0x80] sm:$0xff] %v1271
        %1478 = vst [vmem:[%s252 + $0x88] sm:$0xff] %v1272
        %1479 = vst [vmem:[%s252 + $0x90] sm:$0xff] %v1273
        %1480 = vst [vmem:[%s252 + $0x98] sm:$0xff] %v1274
        %1481 = vst [vmem:[%s252 + $0xa0] sm:$0xff] %v1275
        %1482 = vst [vmem:[%s252 + $0xa8] sm:$0xff] %v1276
        %1483 = vst [vmem:[%s252 + $0xb0] sm:$0xff] %v1277
        %1484 = vst [vmem:[%s252 + $0xb8] sm:$0xff] %v1278
        %1485 = vst [vmem:[%s252 + $0xc0] sm:$0xff] %v1279
        %1486 = vst [vmem:[%s252 + $0xc8] sm:$0xff] %v1280
        %1487 = vst [vmem:[%s252 + $0xd0] sm:$0xff] %v1281
        %1488 = vst [vmem:[%s252 + $0xd8] sm:$0xff] %v1282
        %1489 = vst [vmem:[%s252 + $0xe0] sm:$0xff] %v1283
        %1490 = vst [vmem:[%s252 + $0xe8] sm:$0xff] %v1284
        %1491 = vst [vmem:[%s252 + $0xf0] sm:$0xff] %v1285
        %1492 = vst [vmem:[%s252 + $0xf8] sm:$0xff] %v1286
        %1493 = vst [vmem:[%s252 + $0x100] sm:$0xff] %v1287
        %1494 = vst [vmem:[%s252 + $0x108] sm:$0xff] %v1288
        %1495 = vst [vmem:[%s252 + $0x110] sm:$0xff] %v1289
        %1496 = vst [vmem:[%s252 + $0x118] sm:$0xff] %v1290
        %1497 = vst [vmem:[%s252 + $0x120] sm:$0xff] %v1291
        %1498 = vst [vmem:[%s252 + $0x128] sm:$0xff] %v1292
        %1499 = vst [vmem:[%s252 + $0x130] sm:$0xff] %v1293
        %1500 = vst [vmem:[%s252 + $0x138] sm:$0xff] %v1294
        %1501 = vst [vmem:[%s252 + $0x140] sm:$0xff] %v1295
        %1502 = vst [vmem:[%s252 + $0x148] sm:$0xff] %v1296
        %1503 = vst [vmem:[%s252 + $0x150] sm:$0xff] %v1297
        %1504 = vst [vmem:[%s252 + $0x158] sm:$0xff] %v1298
        %1505 = vst [vmem:[%s252 + $0x160] sm:$0xff] %v1299
        %1506 = vst [vmem:[%s252 + $0x168] sm:$0xff] %v1300
        %1507 = vst [vmem:[%s252 + $0x170] sm:$0xff] %v1301
        %1508 = vst [vmem:[%s252 + $0x178] sm:$0xff] %v1302
        %1509 = vst [vmem:[%s252 + $0x180] sm:$0xff] %v1303
        %1510 = vst [vmem:[%s252 + $0x188] sm:$0xff] %v1304
        %1511 = vst [vmem:[%s252 + $0x190] sm:$0xff] %v1305
        %1512 = vst [vmem:[%s252 + $0x198] sm:$0xff] %v1306
        %1513 = vst [vmem:[%s252 + $0x1a0] sm:$0xff] %v1307
        %1514 = vst [vmem:[%s252 + $0x1a8] sm:$0xff] %v1308
        %1515 = vst [vmem:[%s252 + $0x1b0] sm:$0xff] %v1309
        %1516 = vst [vmem:[%s252 + $0x1b8] sm:$0xff] %v1310
        %1517 = vst [vmem:[%s252 + $0x1c0] sm:$0xff] %v1311
        %1518 = vst [vmem:[%s252 + $0x1c8] sm:$0xff] %v1312
        %1519 = vst [vmem:[%s252 + $0x1d0] sm:$0xff] %v1313
        %1520 = vst [vmem:[%s252 + $0x1d8] sm:$0xff] %v1314
        %1521 = vst [vmem:[%s252 + $0x1e0] sm:$0xff] %v1315
        %1522 = vst [vmem:[%s252 + $0x1e8] sm:$0xff] %v1316
        %1523 = vst [vmem:[%s252 + $0x1f0] sm:$0xff] %v1317
        %1524 = vst [vmem:[%s252 + $0x1f8] sm:$0xff] %v1318
        %p1525 = scmp.lt.s32.totalorder %s21, 1
        %s1526 = scalar_select %p1525, %s21, 1
        %s1527 = smul.addr %s1526, 2
        %s1528 = smul.addr %s1527, 4
        %s1529 = scalar_lea.vmem %s5, %s1528
        %s1530 = sand.u32 %s165, 1
        %s1531 = scalar_lea.sflag [#allocation3], %s1530
        %s1532 = sand.u32 %s165, 1
        %s1533 = smul.addr %s1532, 512
        %s1534 = scalar_lea.vmem [#allocation2], %s1533
        // Predicated region
        $region41: #{self_attention_pallas.1} parent=39 // pred_check
          %p1535 = pneg %p149
        $region42: #{self_attention_pallas.1} parent=39 // pred_check_branch
          %1537 = sbr.rel (%p1535) target = $region44
        $region43: #{self_attention_pallas.1} parent=39 // pred_region
          _
        $region44: #{self_attention_pallas.1} parent=39 // pred_fallthru
          _
        // Predicated region
        $region45: #{self_attention_pallas.1} parent=39 // pred_check
          %p1538 = pneg %p175
        $region46: #{self_attention_pallas.1} parent=39 // pred_check_branch
          %1540 = sbr.rel (%p1538) target = $region48
        $region47: #{self_attention_pallas.1} parent=39 // pred_region
          %1542 = vsyncadd %s1531, 0
          %s1543 = smul.addr %s21, 64
          %s1544 = smul.addr %s1543, 8
          %s1545 = scalar_lea.hbm %s6, %s1544
          %s1546 = sshll.u32 %s1534, 4
          %s1547 = int_to_ptr.vmem [resolvable:$true] %s1546
          %s1548 = sshll.u32 %s1545, 4
          %s1549 = int_to_ptr.hbm [resolvable:$true] %s1548
          %1554 = dma.vmem_to_hbm [thread:$0]  %s1547, 8192, %s1549, %s1531, 256, 256, 16
        $region48: #{self_attention_pallas.1} parent=39 // pred_fallthru
          _
      $region40: #{self_attention_pallas.1} parent=5 // pred_fallthru
        _
      %p1555 = scmp.le.s32.totalorder 2, %s16
      // Predicated region
      $region49: #{self_attention_pallas.1} parent=5 // pred_check
        %p1556 = pneg %p1555
      $region50: #{self_attention_pallas.1} parent=5 // pred_check_branch
        %1558 = sbr.rel (%p1556) target = $region52
      $region51: #{self_attention_pallas.1} parent=5 // pred_region
        %s1559 = ssub.s32 %s16, 2
        // Predicated region
        $region53: #{self_attention_pallas.1} parent=51 // pred_check
          %p1560 = pneg %p155
        $region54: #{self_attention_pallas.1} parent=51 // pred_check_branch
          %1562 = sbr.rel (%p1560) target = $region56
        $region55: #{self_attention_pallas.1} parent=51 // pred_region
          %p1563 = scmp.lt.s32.totalorder %s22, 1
          %s1564 = scalar_select %p1563, %s22, 1
          %s1565 = smul.addr %s1564, 2
          %s1566 = smul.addr %s1565, 4
          %s1567 = scalar_lea.vmem %s5, %s1566
        $region56: #{self_attention_pallas.1} parent=51 // pred_fallthru
          _
        // Predicated region
        $region57: #{self_attention_pallas.1} parent=51 // pred_check
          %p1568 = pneg %p181
        $region58: #{self_attention_pallas.1} parent=51 // pred_check_branch
          %1570 = sbr.rel (%p1568) target = $region60
        $region59: #{self_attention_pallas.1} parent=51 // pred_region
          %s1571 = sand.u32 %s166, 1
          %s1572 = scalar_lea.sflag [#allocation3], %s1571
          %s1573 = sand.u32 %s166, 1
          %s1574 = smul.addr %s1573, 512
          %s1575 = scalar_lea.vmem [#allocation2], %s1574
          %1577 = dma.done %s1572, 8192
        $region60: #{self_attention_pallas.1} parent=51 // pred_fallthru
          _
      $region52: #{self_attention_pallas.1} parent=5 // pred_fallthru
        _
    $region6: #{self_attention_pallas.1} parent=1 // loop_footer
      %s20 = sadd.s32 1, %s16
    $region7: #{self_attention_pallas.1} parent=1 // loop_footer_branch
      %15 = sbr.rel target = $region3
    $region8: #{self_attention_pallas.1} parent=1 // loop_exit
      _
    %1578 = vsyncpa [#allocation3], 1
    %s1579 = scalar_lea.sflag [#allocation3], 1
    %1580 = vsyncpa %s1579, 1

</llo_original>
